<compile_context>
chip_gen: v5e
topology: v5e:2x2
jax: 0.10.0
libtpu: 0.0.40
codegen_flags: <defaults>
</compile_context>

<pallas_src>
import math
from functools import partial

import jax
import jax.numpy as jnp
from jax.experimental import pallas as pl
from jax.experimental.pallas import tpu as pltpu


def _encoder_layer_kernel(q_ref, k_ref, v_ref,
                          wq_ref, bq_ref, wk_ref, bk_ref, wv_ref, bv_ref,
                          wo_ref, bo_ref,
                          w1_ref, b1_ref, w2_ref, b2_ref,
                          ln1w_ref, ln1b_ref, ln2w_ref, ln2b_ref,
                          out_ref, ctx_ref, *, nhead, eps):
    L, B, E = q_ref.shape          # queries per step, batch per step, d_model
    S = k_ref.shape[0]             # key/value sequence length
    Dh = E // nhead
    scale = 1.0 / math.sqrt(Dh)
    cdt = wq_ref.dtype             # matmul operand dtype (f32 or bf16)

    def mm(a, w):                  # MXU matmul, always f32 accumulation
        return jnp.dot(a.astype(cdt), w.astype(cdt),
                       preferred_element_type=jnp.float32)

    # ---- flatten activation blocks to (M, E) rows (l-major, then batch) ----
    x_src = q_ref[...].astype(jnp.float32).reshape(L * B, E)
    x_key = k_ref[...].astype(jnp.float32).reshape(S * B, E)
    x_val = v_ref[...].astype(jnp.float32).reshape(S * B, E)

    # ---- qkv in-projections (weights pre-transposed in the wrapper) --------
    Q = mm(x_src, wq_ref[...]) + bq_ref[...]
    K = mm(x_key, wk_ref[...]) + bk_ref[...]
    V = mm(x_val, wv_ref[...]) + bv_ref[...]

    Q3 = Q.reshape(L, B, E)
    K3 = K.reshape(S, B, E)
    V3 = V.reshape(S, B, E)

    # ---- scaled dot-product attention ---------------------------------------
    # Per-(batch, head) 2-D matmuls (batched dots get unrolled by Mosaic
    # anyway).  Each head's context is stored straight into its final lane
    # offset of a VMEM scratch, so there is no lane-axis concat and the
    # out-projection below is a single (M,E)x(E,E) GEMM.
    nt_dims = (((1,), (1,)), ((), ()))      # A @ B.T without materialising B.T
    for b in range(B):
        for h in range(nhead):
            lo, hi = h * Dh, (h + 1) * Dh
            Qh = Q3[:, b, lo:hi] * scale                        # (L, Dh)
            Kh = K3[:, b, lo:hi]                                # (S, Dh)
            Vh = V3[:, b, lo:hi]                                # (S, Dh)
            s = jax.lax.dot_general(Qh.astype(cdt), Kh.astype(cdt), nt_dims,
                                    preferred_element_type=jnp.float32)
            s = s - jnp.max(s, axis=-1, keepdims=True)
            p = jnp.exp(s)
            inv = pl.reciprocal(jnp.sum(p, axis=-1, keepdims=True), approx=True)
            ctx = jnp.dot(p.astype(cdt), Vh.astype(cdt),
                          preferred_element_type=jnp.float32) * inv
            ctx_ref[:, b:b + 1, lo:hi] = ctx[:, None, :]

    attn = mm(ctx_ref[...].reshape(L * B, E), wo_ref[...]) + bo_ref[...]

    # ---- residual + LayerNorm1 (dropout1 == identity, eval mode) -----------
    x = x_src + attn
    mu = jnp.mean(x, axis=-1, keepdims=True)
    var = jnp.mean((x - mu) ** 2, axis=-1, keepdims=True)
    x = (x - mu) * jax.lax.rsqrt(var + eps) * ln1w_ref[...] + ln1b_ref[...]

    # ---- feed-forward: linear2(relu(linear1(x)))  (dropout == identity) ----
    h1 = jnp.maximum(mm(x, w1_ref[...]) + b1_ref[...], 0.0)
    ff = mm(h1, w2_ref[...]) + b2_ref[...]

    # ---- residual + LayerNorm2 (dropout2 == identity) -----------------------
    y = x + ff
    mu2 = jnp.mean(y, axis=-1, keepdims=True)
    var2 = jnp.mean((y - mu2) ** 2, axis=-1, keepdims=True)
    y = (y - mu2) * jax.lax.rsqrt(var2 + eps) * ln2w_ref[...] + ln2b_ref[...]

    out_ref[...] = y.reshape(L, B, E).astype(out_ref.dtype)


def _pick_batch_block(n_batch, seq_len, target_rows=256):
    """Batch elements per grid step.

    Aims for >= target_rows GEMM rows per step while keeping the second-minor
    block dim legal: either the full batch, or a multiple of 8 dividing it.
    """
    if n_batch * seq_len <= target_rows:
        return n_batch
    nb = 8
    while nb < n_batch:
        if n_batch % nb == 0 and nb * seq_len >= target_rows:
            return nb
        nb += 8
    return n_batch


def skv_transformer_encoder_layer(src, key, value, params, *, nhead,
                                  eps=1e-5, compute_dtype=jnp.float32,
                                  batch_block=None):
    """src: (L, N, E), key/value: (S, N, E) -- PyTorch batch_first=False.

    compute_dtype: dtype of the MXU matmul operands (jnp.float32 or
    jnp.bfloat16); accumulation is always f32.
    """
    L, N, E = src.shape
    S = key.shape[0]

    Nb = _pick_batch_block(N, L) if batch_block is None else batch_block
    assert N % Nb == 0, "batch block must divide the batch"

    wt = lambda w: w.T.astype(compute_dtype)          # pre-transposed weights
    row = lambda v: v.astype(jnp.float32).reshape(1, -1)

    wqkv, bqkv = params["in_proj_w"], params["in_proj_b"]
    weights = (
        wt(wqkv[0:E]),        row(bqkv[0:E]),         # q in-proj
        wt(wqkv[E:2 * E]),    row(bqkv[E:2 * E]),     # k in-proj
        wt(wqkv[2 * E:]),     row(bqkv[2 * E:]),      # v in-proj
        wt(params["out_proj_w"]), row(params["out_proj_b"]),
        wt(params["w1"]),     row(params["b1"]),      # linear1: (E, F)
        wt(params["w2"]),     row(params["b2"]),      # linear2: (F, E)
        row(params["ln1_w"]), row(params["ln1_b"]),
        row(params["ln2_w"]), row(params["ln2_b"]),
    )

    def act_spec(T):
        # Direct (seq, batch, E) reads: block over the batch (middle) axis.
        return pl.BlockSpec((T, Nb, E), lambda b: (0, b, 0))

    def full_spec(arr):
        # Constant index map -> block stays resident, no per-step re-DMA.
        return pl.BlockSpec(arr.shape, lambda b: (0,) * arr.ndim)

    kernel = partial(_encoder_layer_kernel, nhead=nhead, eps=eps)

    out = pl.pallas_call(
        kernel,
        out_shape=jax.ShapeDtypeStruct((L, N, E), src.dtype),
        grid_spec=pltpu.PrefetchScalarGridSpec(
            num_scalar_prefetch=0,
            grid=(N // Nb,),
            in_specs=[act_spec(L), act_spec(S), act_spec(S)]
                     + [full_spec(w) for w in weights],
            out_specs=act_spec(L),
            scratch_shapes=[pltpu.VMEM((L, Nb, E), jnp.float32)],
        ),
        compiler_params=pltpu.CompilerParams(
            dimension_semantics=("parallel",),
            vmem_limit_bytes=48 * 1024 * 1024,
        ),
    )(src, key, value, *weights)

    return out


def _reference(src, key, value, params, nhead, eps=1e-5):
    """Pure-JAX reference matching torch semantics (eval mode)."""
    L, N, E = src.shape
    Dh = E // nhead
    wqkv, bqkv = params["in_proj_w"], params["in_proj_b"]
    q = src @ wqkv[:E].T + bqkv[:E]
    k = key @ wqkv[E:2 * E].T + bqkv[E:2 * E]
    v = value @ wqkv[2 * E:].T + bqkv[2 * E:]

    def split(x):
        Lx = x.shape[0]
        return jnp.transpose(x.reshape(Lx, N, nhead, Dh), (1, 2, 0, 3))

    qh, kh, vh = split(q), split(k), split(v)
    s = jnp.einsum('nhld,nhsd->nhls', qh, kh) / math.sqrt(Dh)
    p = jax.nn.softmax(s, axis=-1)
    o = jnp.einsum('nhls,nhsd->nhld', p, vh)
    o = jnp.transpose(o, (2, 0, 1, 3)).reshape(L, N, E)
    attn = o @ params["out_proj_w"].T + params["out_proj_b"]

    def ln(x, w, b):
        mu = x.mean(-1, keepdims=True)
        var = ((x - mu) ** 2).mean(-1, keepdims=True)
        return (x - mu) / jnp.sqrt(var + eps) * w + b

    x = ln(src + attn, params["ln1_w"], params["ln1_b"])
    h = jnp.maximum(x @ params["w1"].T + params["b1"], 0.0)
    ff = h @ params["w2"].T + params["b2"]
    return ln(x + ff, params["ln2_w"], params["ln2_b"])


if __name__ == "__main__":
    # Small shapes consistent with the module:
    #   seq L = S = 8, batch N = 2, d_model = 32, nhead = 4, dim_feedforward = 64
    L, S, N, E, H, F = 8, 8, 2, 32, 4, 64

    key0 = jax.random.PRNGKey(0)
    ks = jax.random.split(key0, 12)
    init = lambda k, shape, s=0.05: (s * jax.random.normal(k, shape)).astype(jnp.float32)

    params = {
        "in_proj_w": init(ks[0], (3 * E, E)),
        "in_proj_b": init(ks[1], (3 * E,)),
        "out_proj_w": init(ks[2], (E, E)),
        "out_proj_b": init(ks[3], (E,)),
        "w1": init(ks[4], (F, E)),
        "b1": init(ks[5], (F,)),
        "w2": init(ks[6], (E, F)),
        "b2": init(ks[7], (E,)),
        "ln1_w": jnp.ones((E,), jnp.float32),
        "ln1_b": jnp.zeros((E,), jnp.float32),
        "ln2_w": jnp.ones((E,), jnp.float32),
        "ln2_b": jnp.zeros((E,), jnp.float32),
    }

    src = init(ks[8], (L, N, E), s=1.0)
    key_t = init(ks[9], (S, N, E), s=1.0)
    value = init(ks[10], (S, N, E), s=1.0)

    ref = _reference(src, key_t, value, params, nhead=H)

    # f32 matmul-operand path (v5e-safe); tolerance covers the approx
    # reciprocal used for the softmax denominator.
    out = skv_transformer_encoder_layer(src, key_t, value, params, nhead=H)
    out = jax.block_until_ready(out)
    assert out.shape == (L, N, E)
    assert jnp.allclose(out, ref, atol=3e-3, rtol=3e-3), "f32 path mismatch"

    # bf16 MXU-operand path (v6e/v7x), f32 accumulation -> looser tolerance.
    out_bf16 = skv_transformer_encoder_layer(src, key_t, value, params,
                                             nhead=H,
                                             compute_dtype=jnp.bfloat16)
    out_bf16 = jax.block_until_ready(out_bf16)
    assert jnp.allclose(out_bf16, ref, atol=5e-2, rtol=5e-2), "bf16 path mismatch"

    print("KERNEL_OK")
</pallas_src>

<mosaic_0001>
module attributes {stable_mosaic.version = 11 : i64} {
  func.func @_encoder_layer_kernel(%arg0: i32, %arg1: memref<8x2x32xf32, #tpu.memory_space<vmem>>, %arg2: memref<8x2x32xf32, #tpu.memory_space<vmem>>, %arg3: memref<8x2x32xf32, #tpu.memory_space<vmem>>, %arg4: memref<32x32xf32, #tpu.memory_space<vmem>>, %arg5: memref<1x32xf32, #tpu.memory_space<vmem>>, %arg6: memref<32x32xf32, #tpu.memory_space<vmem>>, %arg7: memref<1x32xf32, #tpu.memory_space<vmem>>, %arg8: memref<32x32xf32, #tpu.memory_space<vmem>>, %arg9: memref<1x32xf32, #tpu.memory_space<vmem>>, %arg10: memref<32x32xf32, #tpu.memory_space<vmem>>, %arg11: memref<1x32xf32, #tpu.memory_space<vmem>>, %arg12: memref<32x64xf32, #tpu.memory_space<vmem>>, %arg13: memref<1x64xf32, #tpu.memory_space<vmem>>, %arg14: memref<64x32xf32, #tpu.memory_space<vmem>>, %arg15: memref<1x32xf32, #tpu.memory_space<vmem>>, %arg16: memref<1x32xf32, #tpu.memory_space<vmem>>, %arg17: memref<1x32xf32, #tpu.memory_space<vmem>>, %arg18: memref<1x32xf32, #tpu.memory_space<vmem>>, %arg19: memref<1x32xf32, #tpu.memory_space<vmem>>, %arg20: memref<8x2x32xf32, #tpu.memory_space<vmem>>, %arg21: memref<8x2x32xf32, #tpu.memory_space<vmem>>) attributes {dimension_semantics = [#tpu.dimension_semantics<parallel>], iteration_bounds = array<i64: 1>, scalar_prefetch = 0 : i64, scratch_operands = 1 : i64, tpu.core_type = #tpu.core_type<tc>, window_params = [{transform_indices = @transform_0, window_bounds = array<i64: 8, 2, 32>}, {transform_indices = @transform_1, window_bounds = array<i64: 8, 2, 32>}, {transform_indices = @transform_2, window_bounds = array<i64: 8, 2, 32>}, {pipeline_mode = #tpu.pipeline_mode<synchronous>, transform_indices = @transform_3, window_bounds = array<i64: 32, 32>}, {pipeline_mode = #tpu.pipeline_mode<synchronous>, transform_indices = @transform_4, window_bounds = array<i64: 1, 32>}, {pipeline_mode = #tpu.pipeline_mode<synchronous>, transform_indices = @transform_5, window_bounds = array<i64: 32, 32>}, {pipeline_mode = #tpu.pipeline_mode<synchronous>, transform_indices = @transform_6, window_bounds = array<i64: 1, 32>}, {pipeline_mode = #tpu.pipeline_mode<synchronous>, transform_indices = @transform_7, window_bounds = array<i64: 32, 32>}, {pipeline_mode = #tpu.pipeline_mode<synchronous>, transform_indices = @transform_8, window_bounds = array<i64: 1, 32>}, {pipeline_mode = #tpu.pipeline_mode<synchronous>, transform_indices = @transform_9, window_bounds = array<i64: 32, 32>}, {pipeline_mode = #tpu.pipeline_mode<synchronous>, transform_indices = @transform_10, window_bounds = array<i64: 1, 32>}, {pipeline_mode = #tpu.pipeline_mode<synchronous>, transform_indices = @transform_11, window_bounds = array<i64: 32, 64>}, {pipeline_mode = #tpu.pipeline_mode<synchronous>, transform_indices = @transform_12, window_bounds = array<i64: 1, 64>}, {pipeline_mode = #tpu.pipeline_mode<synchronous>, transform_indices = @transform_13, window_bounds = array<i64: 64, 32>}, {pipeline_mode = #tpu.pipeline_mode<synchronous>, transform_indices = @transform_14, window_bounds = array<i64: 1, 32>}, {pipeline_mode = #tpu.pipeline_mode<synchronous>, transform_indices = @transform_15, window_bounds = array<i64: 1, 32>}, {pipeline_mode = #tpu.pipeline_mode<synchronous>, transform_indices = @transform_16, window_bounds = array<i64: 1, 32>}, {pipeline_mode = #tpu.pipeline_mode<synchronous>, transform_indices = @transform_17, window_bounds = array<i64: 1, 32>}, {pipeline_mode = #tpu.pipeline_mode<synchronous>, transform_indices = @transform_18, window_bounds = array<i64: 1, 32>}, {transform_indices = @transform_19, window_bounds = array<i64: 8, 2, 32>}]} {
    %c0 = arith.constant 0 : index
    %c0_0 = arith.constant 0 : index
    %c0_1 = arith.constant 0 : index
    %0 = vector.load %arg1[%c0, %c0_0, %c0_1] : memref<8x2x32xf32, #tpu.memory_space<vmem>>, vector<8x2x32xf32>
    %1 = vector.shape_cast %0 : vector<8x2x32xf32> to vector<16x32xf32>
    %c0_2 = arith.constant 0 : index
    %c0_3 = arith.constant 0 : index
    %c0_4 = arith.constant 0 : index
    %2 = vector.load %arg2[%c0_2, %c0_3, %c0_4] : memref<8x2x32xf32, #tpu.memory_space<vmem>>, vector<8x2x32xf32>
    %3 = vector.shape_cast %2 : vector<8x2x32xf32> to vector<16x32xf32>
    %c0_5 = arith.constant 0 : index
    %c0_6 = arith.constant 0 : index
    %c0_7 = arith.constant 0 : index
    %4 = vector.load %arg3[%c0_5, %c0_6, %c0_7] : memref<8x2x32xf32, #tpu.memory_space<vmem>>, vector<8x2x32xf32>
    %5 = vector.shape_cast %4 : vector<8x2x32xf32> to vector<16x32xf32>
    %c0_8 = arith.constant 0 : index
    %c0_9 = arith.constant 0 : index
    %6 = vector.load %arg4[%c0_8, %c0_9] : memref<32x32xf32, #tpu.memory_space<vmem>>, vector<32x32xf32>
    %cst = arith.constant dense<0.000000e+00> : vector<16x32xf32>
    %7 = tpu.matmul %1, %6, %cst {dimension_numbers = #tpu.dot_dimension_numbers<[1], [0], [0], [1], [0, 0, 1, 1], [], []>} : vector<16x32xf32>, vector<32x32xf32>, vector<16x32xf32> -> vector<16x32xf32>
    %c0_10 = arith.constant 0 : index
    %c0_11 = arith.constant 0 : index
    %8 = vector.load %arg5[%c0_10, %c0_11] : memref<1x32xf32, #tpu.memory_space<vmem>>, vector<1x32xf32>
    %9 = vector.broadcast %8 : vector<1x32xf32> to vector<16x32xf32>
    %10 = arith.addf %7, %9 : vector<16x32xf32>
    %c0_12 = arith.constant 0 : index
    %c0_13 = arith.constant 0 : index
    %11 = vector.load %arg6[%c0_12, %c0_13] : memref<32x32xf32, #tpu.memory_space<vmem>>, vector<32x32xf32>
    %cst_14 = arith.constant dense<0.000000e+00> : vector<16x32xf32>
    %12 = tpu.matmul %3, %11, %cst_14 {dimension_numbers = #tpu.dot_dimension_numbers<[1], [0], [0], [1], [0, 0, 1, 1], [], []>} : vector<16x32xf32>, vector<32x32xf32>, vector<16x32xf32> -> vector<16x32xf32>
    %c0_15 = arith.constant 0 : index
    %c0_16 = arith.constant 0 : index
    %13 = vector.load %arg7[%c0_15, %c0_16] : memref<1x32xf32, #tpu.memory_space<vmem>>, vector<1x32xf32>
    %14 = vector.broadcast %13 : vector<1x32xf32> to vector<16x32xf32>
    %15 = arith.addf %12, %14 : vector<16x32xf32>
    %c0_17 = arith.constant 0 : index
    %c0_18 = arith.constant 0 : index
    %16 = vector.load %arg8[%c0_17, %c0_18] : memref<32x32xf32, #tpu.memory_space<vmem>>, vector<32x32xf32>
    %cst_19 = arith.constant dense<0.000000e+00> : vector<16x32xf32>
    %17 = tpu.matmul %5, %16, %cst_19 {dimension_numbers = #tpu.dot_dimension_numbers<[1], [0], [0], [1], [0, 0, 1, 1], [], []>} : vector<16x32xf32>, vector<32x32xf32>, vector<16x32xf32> -> vector<16x32xf32>
    %c0_20 = arith.constant 0 : index
    %c0_21 = arith.constant 0 : index
    %18 = vector.load %arg9[%c0_20, %c0_21] : memref<1x32xf32, #tpu.memory_space<vmem>>, vector<1x32xf32>
    %19 = vector.broadcast %18 : vector<1x32xf32> to vector<16x32xf32>
    %20 = arith.addf %17, %19 : vector<16x32xf32>
    %21 = vector.shape_cast %10 : vector<16x32xf32> to vector<8x2x32xf32>
    %22 = vector.shape_cast %15 : vector<16x32xf32> to vector<8x2x32xf32>
    %23 = vector.shape_cast %20 : vector<16x32xf32> to vector<8x2x32xf32>
    %24 = vector.extract_strided_slice %21 {offsets = [0, 0, 0], sizes = [8, 1, 8], strides = [1, 1, 1]} : vector<8x2x32xf32> to vector<8x1x8xf32>
    %25 = vector.shape_cast %24 : vector<8x1x8xf32> to vector<8x8xf32>
    %cst_22 = arith.constant 0.353553385 : f32
    %26 = vector.broadcast %cst_22 : f32 to vector<8x8xf32>
    %27 = arith.mulf %25, %26 : vector<8x8xf32>
    %28 = vector.extract_strided_slice %22 {offsets = [0, 0, 0], sizes = [8, 1, 8], strides = [1, 1, 1]} : vector<8x2x32xf32> to vector<8x1x8xf32>
    %29 = vector.shape_cast %28 : vector<8x1x8xf32> to vector<8x8xf32>
    %30 = vector.extract_strided_slice %23 {offsets = [0, 0, 0], sizes = [8, 1, 8], strides = [1, 1, 1]} : vector<8x2x32xf32> to vector<8x1x8xf32>
    %31 = vector.shape_cast %30 : vector<8x1x8xf32> to vector<8x8xf32>
    %cst_23 = arith.constant dense<0.000000e+00> : vector<8x8xf32>
    %32 = tpu.matmul %27, %29, %cst_23 {dimension_numbers = #tpu.dot_dimension_numbers<[1], [1], [0], [0], [0, 0, 1, 0], [], []>} : vector<8x8xf32>, vector<8x8xf32>, vector<8x8xf32> -> vector<8x8xf32>
    %cst_24 = arith.constant dense<0xFF800000> : vector<8xf32>
    %33 = vector.multi_reduction <maximumf>, %32, %cst_24 [1] : vector<8x8xf32> to vector<8xf32>
    %34 = vector.shape_cast %33 : vector<8xf32> to vector<8x1xf32>
    %35 = vector.broadcast %34 : vector<8x1xf32> to vector<8x8xf32>
    %36 = arith.subf %32, %35 : vector<8x8xf32>
    %37 = math.exp %36 : vector<8x8xf32>
    %cst_25 = arith.constant dense<0.000000e+00> : vector<8xf32>
    %38 = vector.multi_reduction <add>, %37, %cst_25 [1] : vector<8x8xf32> to vector<8xf32>
    %39 = vector.shape_cast %38 : vector<8xf32> to vector<8x1xf32>
    %40 = tpu.reciprocal %39 {approx = true} : vector<8x1xf32> -> vector<8x1xf32>
    %cst_26 = arith.constant dense<0.000000e+00> : vector<8x8xf32>
    %41 = tpu.matmul %37, %31, %cst_26 {dimension_numbers = #tpu.dot_dimension_numbers<[1], [0], [0], [1], [0, 0, 1, 1], [], []>} : vector<8x8xf32>, vector<8x8xf32>, vector<8x8xf32> -> vector<8x8xf32>
    %42 = vector.broadcast %40 : vector<8x1xf32> to vector<8x8xf32>
    %43 = arith.mulf %41, %42 : vector<8x8xf32>
    %44 = vector.shape_cast %43 : vector<8x8xf32> to vector<8x1x8xf32>
    %c0_27 = arith.constant 0 : index
    %c0_28 = arith.constant 0 : index
    %c0_29 = arith.constant 0 : index
    %45 = vector.load %arg21[%c0_27, %c0_28, %c0_29] : memref<8x2x32xf32, #tpu.memory_space<vmem>>, vector<8x1x8xf32>
    tpu.vector_store %arg21[%c0_27, %c0_28, %c0_29], %44 {strides = array<i32>} : memref<8x2x32xf32, #tpu.memory_space<vmem>>, vector<8x1x8xf32>,
    %46 = vector.extract_strided_slice %21 {offsets = [0, 0, 8], sizes = [8, 1, 8], strides = [1, 1, 1]} : vector<8x2x32xf32> to vector<8x1x8xf32>
    %47 = vector.shape_cast %46 : vector<8x1x8xf32> to vector<8x8xf32>
    %cst_30 = arith.constant 0.353553385 : f32
    %48 = vector.broadcast %cst_30 : f32 to vector<8x8xf32>
    %49 = arith.mulf %47, %48 : vector<8x8xf32>
    %50 = vector.extract_strided_slice %22 {offsets = [0, 0, 8], sizes = [8, 1, 8], strides = [1, 1, 1]} : vector<8x2x32xf32> to vector<8x1x8xf32>
    %51 = vector.shape_cast %50 : vector<8x1x8xf32> to vector<8x8xf32>
    %52 = vector.extract_strided_slice %23 {offsets = [0, 0, 8], sizes = [8, 1, 8], strides = [1, 1, 1]} : vector<8x2x32xf32> to vector<8x1x8xf32>
    %53 = vector.shape_cast %52 : vector<8x1x8xf32> to vector<8x8xf32>
    %cst_31 = arith.constant dense<0.000000e+00> : vector<8x8xf32>
    %54 = tpu.matmul %49, %51, %cst_31 {dimension_numbers = #tpu.dot_dimension_numbers<[1], [1], [0], [0], [0, 0, 1, 0], [], []>} : vector<8x8xf32>, vector<8x8xf32>, vector<8x8xf32> -> vector<8x8xf32>
    %cst_32 = arith.constant dense<0xFF800000> : vector<8xf32>
    %55 = vector.multi_reduction <maximumf>, %54, %cst_32 [1] : vector<8x8xf32> to vector<8xf32>
    %56 = vector.shape_cast %55 : vector<8xf32> to vector<8x1xf32>
    %57 = vector.broadcast %56 : vector<8x1xf32> to vector<8x8xf32>
    %58 = arith.subf %54, %57 : vector<8x8xf32>
    %59 = math.exp %58 : vector<8x8xf32>
    %cst_33 = arith.constant dense<0.000000e+00> : vector<8xf32>
    %60 = vector.multi_reduction <add>, %59, %cst_33 [1] : vector<8x8xf32> to vector<8xf32>
    %61 = vector.shape_cast %60 : vector<8xf32> to vector<8x1xf32>
    %62 = tpu.reciprocal %61 {approx = true} : vector<8x1xf32> -> vector<8x1xf32>
    %cst_34 = arith.constant dense<0.000000e+00> : vector<8x8xf32>
    %63 = tpu.matmul %59, %53, %cst_34 {dimension_numbers = #tpu.dot_dimension_numbers<[1], [0], [0], [1], [0, 0, 1, 1], [], []>} : vector<8x8xf32>, vector<8x8xf32>, vector<8x8xf32> -> vector<8x8xf32>
    %64 = vector.broadcast %62 : vector<8x1xf32> to vector<8x8xf32>
    %65 = arith.mulf %63, %64 : vector<8x8xf32>
    %66 = vector.shape_cast %65 : vector<8x8xf32> to vector<8x1x8xf32>
    %c0_35 = arith.constant 0 : index
    %c0_36 = arith.constant 0 : index
    %c8 = arith.constant 8 : index
    %67 = vector.load %arg21[%c0_35, %c0_36, %c8] : memref<8x2x32xf32, #tpu.memory_space<vmem>>, vector<8x1x8xf32>
    tpu.vector_store %arg21[%c0_35, %c0_36, %c8], %66 {strides = array<i32>} : memref<8x2x32xf32, #tpu.memory_space<vmem>>, vector<8x1x8xf32>,
    %68 = vector.extract_strided_slice %21 {offsets = [0, 0, 16], sizes = [8, 1, 8], strides = [1, 1, 1]} : vector<8x2x32xf32> to vector<8x1x8xf32>
    %69 = vector.shape_cast %68 : vector<8x1x8xf32> to vector<8x8xf32>
    %cst_37 = arith.constant 0.353553385 : f32
    %70 = vector.broadcast %cst_37 : f32 to vector<8x8xf32>
    %71 = arith.mulf %69, %70 : vector<8x8xf32>
    %72 = vector.extract_strided_slice %22 {offsets = [0, 0, 16], sizes = [8, 1, 8], strides = [1, 1, 1]} : vector<8x2x32xf32> to vector<8x1x8xf32>
    %73 = vector.shape_cast %72 : vector<8x1x8xf32> to vector<8x8xf32>
    %74 = vector.extract_strided_slice %23 {offsets = [0, 0, 16], sizes = [8, 1, 8], strides = [1, 1, 1]} : vector<8x2x32xf32> to vector<8x1x8xf32>
    %75 = vector.shape_cast %74 : vector<8x1x8xf32> to vector<8x8xf32>
    %cst_38 = arith.constant dense<0.000000e+00> : vector<8x8xf32>
    %76 = tpu.matmul %71, %73, %cst_38 {dimension_numbers = #tpu.dot_dimension_numbers<[1], [1], [0], [0], [0, 0, 1, 0], [], []>} : vector<8x8xf32>, vector<8x8xf32>, vector<8x8xf32> -> vector<8x8xf32>
    %cst_39 = arith.constant dense<0xFF800000> : vector<8xf32>
    %77 = vector.multi_reduction <maximumf>, %76, %cst_39 [1] : vector<8x8xf32> to vector<8xf32>
    %78 = vector.shape_cast %77 : vector<8xf32> to vector<8x1xf32>
    %79 = vector.broadcast %78 : vector<8x1xf32> to vector<8x8xf32>
    %80 = arith.subf %76, %79 : vector<8x8xf32>
    %81 = math.exp %80 : vector<8x8xf32>
    %cst_40 = arith.constant dense<0.000000e+00> : vector<8xf32>
    %82 = vector.multi_reduction <add>, %81, %cst_40 [1] : vector<8x8xf32> to vector<8xf32>
    %83 = vector.shape_cast %82 : vector<8xf32> to vector<8x1xf32>
    %84 = tpu.reciprocal %83 {approx = true} : vector<8x1xf32> -> vector<8x1xf32>
    %cst_41 = arith.constant dense<0.000000e+00> : vector<8x8xf32>
    %85 = tpu.matmul %81, %75, %cst_41 {dimension_numbers = #tpu.dot_dimension_numbers<[1], [0], [0], [1], [0, 0, 1, 1], [], []>} : vector<8x8xf32>, vector<8x8xf32>, vector<8x8xf32> -> vector<8x8xf32>
    %86 = vector.broadcast %84 : vector<8x1xf32> to vector<8x8xf32>
    %87 = arith.mulf %85, %86 : vector<8x8xf32>
    %88 = vector.shape_cast %87 : vector<8x8xf32> to vector<8x1x8xf32>
    %c0_42 = arith.constant 0 : index
    %c0_43 = arith.constant 0 : index
    %c16 = arith.constant 16 : index
    %89 = vector.load %arg21[%c0_42, %c0_43, %c16] : memref<8x2x32xf32, #tpu.memory_space<vmem>>, vector<8x1x8xf32>
    tpu.vector_store %arg21[%c0_42, %c0_43, %c16], %88 {strides = array<i32>} : memref<8x2x32xf32, #tpu.memory_space<vmem>>, vector<8x1x8xf32>,
    %90 = vector.extract_strided_slice %21 {offsets = [0, 0, 24], sizes = [8, 1, 8], strides = [1, 1, 1]} : vector<8x2x32xf32> to vector<8x1x8xf32>
    %91 = vector.shape_cast %90 : vector<8x1x8xf32> to vector<8x8xf32>
    %cst_44 = arith.constant 0.353553385 : f32
    %92 = vector.broadcast %cst_44 : f32 to vector<8x8xf32>
    %93 = arith.mulf %91, %92 : vector<8x8xf32>
    %94 = vector.extract_strided_slice %22 {offsets = [0, 0, 24], sizes = [8, 1, 8], strides = [1, 1, 1]} : vector<8x2x32xf32> to vector<8x1x8xf32>
    %95 = vector.shape_cast %94 : vector<8x1x8xf32> to vector<8x8xf32>
    %96 = vector.extract_strided_slice %23 {offsets = [0, 0, 24], sizes = [8, 1, 8], strides = [1, 1, 1]} : vector<8x2x32xf32> to vector<8x1x8xf32>
    %97 = vector.shape_cast %96 : vector<8x1x8xf32> to vector<8x8xf32>
    %cst_45 = arith.constant dense<0.000000e+00> : vector<8x8xf32>
    %98 = tpu.matmul %93, %95, %cst_45 {dimension_numbers = #tpu.dot_dimension_numbers<[1], [1], [0], [0], [0, 0, 1, 0], [], []>} : vector<8x8xf32>, vector<8x8xf32>, vector<8x8xf32> -> vector<8x8xf32>
    %cst_46 = arith.constant dense<0xFF800000> : vector<8xf32>
    %99 = vector.multi_reduction <maximumf>, %98, %cst_46 [1] : vector<8x8xf32> to vector<8xf32>
    %100 = vector.shape_cast %99 : vector<8xf32> to vector<8x1xf32>
    %101 = vector.broadcast %100 : vector<8x1xf32> to vector<8x8xf32>
    %102 = arith.subf %98, %101 : vector<8x8xf32>
    %103 = math.exp %102 : vector<8x8xf32>
    %cst_47 = arith.constant dense<0.000000e+00> : vector<8xf32>
    %104 = vector.multi_reduction <add>, %103, %cst_47 [1] : vector<8x8xf32> to vector<8xf32>
    %105 = vector.shape_cast %104 : vector<8xf32> to vector<8x1xf32>
    %106 = tpu.reciprocal %105 {approx = true} : vector<8x1xf32> -> vector<8x1xf32>
    %cst_48 = arith.constant dense<0.000000e+00> : vector<8x8xf32>
    %107 = tpu.matmul %103, %97, %cst_48 {dimension_numbers = #tpu.dot_dimension_numbers<[1], [0], [0], [1], [0, 0, 1, 1], [], []>} : vector<8x8xf32>, vector<8x8xf32>, vector<8x8xf32> -> vector<8x8xf32>
    %108 = vector.broadcast %106 : vector<8x1xf32> to vector<8x8xf32>
    %109 = arith.mulf %107, %108 : vector<8x8xf32>
    %110 = vector.shape_cast %109 : vector<8x8xf32> to vector<8x1x8xf32>
    %c0_49 = arith.constant 0 : index
    %c0_50 = arith.constant 0 : index
    %c24 = arith.constant 24 : index
    %111 = vector.load %arg21[%c0_49, %c0_50, %c24] : memref<8x2x32xf32, #tpu.memory_space<vmem>>, vector<8x1x8xf32>
    tpu.vector_store %arg21[%c0_49, %c0_50, %c24], %110 {strides = array<i32>} : memref<8x2x32xf32, #tpu.memory_space<vmem>>, vector<8x1x8xf32>,
    %112 = vector.extract_strided_slice %21 {offsets = [0, 1, 0], sizes = [8, 1, 8], strides = [1, 1, 1]} : vector<8x2x32xf32> to vector<8x1x8xf32>
    %113 = vector.shape_cast %112 : vector<8x1x8xf32> to vector<8x8xf32>
    %cst_51 = arith.constant 0.353553385 : f32
    %114 = vector.broadcast %cst_51 : f32 to vector<8x8xf32>
    %115 = arith.mulf %113, %114 : vector<8x8xf32>
    %116 = vector.extract_strided_slice %22 {offsets = [0, 1, 0], sizes = [8, 1, 8], strides = [1, 1, 1]} : vector<8x2x32xf32> to vector<8x1x8xf32>
    %117 = vector.shape_cast %116 : vector<8x1x8xf32> to vector<8x8xf32>
    %118 = vector.extract_strided_slice %23 {offsets = [0, 1, 0], sizes = [8, 1, 8], strides = [1, 1, 1]} : vector<8x2x32xf32> to vector<8x1x8xf32>
    %119 = vector.shape_cast %118 : vector<8x1x8xf32> to vector<8x8xf32>
    %cst_52 = arith.constant dense<0.000000e+00> : vector<8x8xf32>
    %120 = tpu.matmul %115, %117, %cst_52 {dimension_numbers = #tpu.dot_dimension_numbers<[1], [1], [0], [0], [0, 0, 1, 0], [], []>} : vector<8x8xf32>, vector<8x8xf32>, vector<8x8xf32> -> vector<8x8xf32>
    %cst_53 = arith.constant dense<0xFF800000> : vector<8xf32>
    %121 = vector.multi_reduction <maximumf>, %120, %cst_53 [1] : vector<8x8xf32> to vector<8xf32>
    %122 = vector.shape_cast %121 : vector<8xf32> to vector<8x1xf32>
    %123 = vector.broadcast %122 : vector<8x1xf32> to vector<8x8xf32>
    %124 = arith.subf %120, %123 : vector<8x8xf32>
    %125 = math.exp %124 : vector<8x8xf32>
    %cst_54 = arith.constant dense<0.000000e+00> : vector<8xf32>
    %126 = vector.multi_reduction <add>, %125, %cst_54 [1] : vector<8x8xf32> to vector<8xf32>
    %127 = vector.shape_cast %126 : vector<8xf32> to vector<8x1xf32>
    %128 = tpu.reciprocal %127 {approx = true} : vector<8x1xf32> -> vector<8x1xf32>
    %cst_55 = arith.constant dense<0.000000e+00> : vector<8x8xf32>
    %129 = tpu.matmul %125, %119, %cst_55 {dimension_numbers = #tpu.dot_dimension_numbers<[1], [0], [0], [1], [0, 0, 1, 1], [], []>} : vector<8x8xf32>, vector<8x8xf32>, vector<8x8xf32> -> vector<8x8xf32>
    %130 = vector.broadcast %128 : vector<8x1xf32> to vector<8x8xf32>
    %131 = arith.mulf %129, %130 : vector<8x8xf32>
    %132 = vector.shape_cast %131 : vector<8x8xf32> to vector<8x1x8xf32>
    %c0_56 = arith.constant 0 : index
    %c1 = arith.constant 1 : index
    %c0_57 = arith.constant 0 : index
    %133 = vector.load %arg21[%c0_56, %c1, %c0_57] : memref<8x2x32xf32, #tpu.memory_space<vmem>>, vector<8x1x8xf32>
    tpu.vector_store %arg21[%c0_56, %c1, %c0_57], %132 {strides = array<i32>} : memref<8x2x32xf32, #tpu.memory_space<vmem>>, vector<8x1x8xf32>,
    %134 = vector.extract_strided_slice %21 {offsets = [0, 1, 8], sizes = [8, 1, 8], strides = [1, 1, 1]} : vector<8x2x32xf32> to vector<8x1x8xf32>
    %135 = vector.shape_cast %134 : vector<8x1x8xf32> to vector<8x8xf32>
    %cst_58 = arith.constant 0.353553385 : f32
    %136 = vector.broadcast %cst_58 : f32 to vector<8x8xf32>
    %137 = arith.mulf %135, %136 : vector<8x8xf32>
    %138 = vector.extract_strided_slice %22 {offsets = [0, 1, 8], sizes = [8, 1, 8], strides = [1, 1, 1]} : vector<8x2x32xf32> to vector<8x1x8xf32>
    %139 = vector.shape_cast %138 : vector<8x1x8xf32> to vector<8x8xf32>
    %140 = vector.extract_strided_slice %23 {offsets = [0, 1, 8], sizes = [8, 1, 8], strides = [1, 1, 1]} : vector<8x2x32xf32> to vector<8x1x8xf32>
    %141 = vector.shape_cast %140 : vector<8x1x8xf32> to vector<8x8xf32>
    %cst_59 = arith.constant dense<0.000000e+00> : vector<8x8xf32>
    %142 = tpu.matmul %137, %139, %cst_59 {dimension_numbers = #tpu.dot_dimension_numbers<[1], [1], [0], [0], [0, 0, 1, 0], [], []>} : vector<8x8xf32>, vector<8x8xf32>, vector<8x8xf32> -> vector<8x8xf32>
    %cst_60 = arith.constant dense<0xFF800000> : vector<8xf32>
    %143 = vector.multi_reduction <maximumf>, %142, %cst_60 [1] : vector<8x8xf32> to vector<8xf32>
    %144 = vector.shape_cast %143 : vector<8xf32> to vector<8x1xf32>
    %145 = vector.broadcast %144 : vector<8x1xf32> to vector<8x8xf32>
    %146 = arith.subf %142, %145 : vector<8x8xf32>
    %147 = math.exp %146 : vector<8x8xf32>
    %cst_61 = arith.constant dense<0.000000e+00> : vector<8xf32>
    %148 = vector.multi_reduction <add>, %147, %cst_61 [1] : vector<8x8xf32> to vector<8xf32>
    %149 = vector.shape_cast %148 : vector<8xf32> to vector<8x1xf32>
    %150 = tpu.reciprocal %149 {approx = true} : vector<8x1xf32> -> vector<8x1xf32>
    %cst_62 = arith.constant dense<0.000000e+00> : vector<8x8xf32>
    %151 = tpu.matmul %147, %141, %cst_62 {dimension_numbers = #tpu.dot_dimension_numbers<[1], [0], [0], [1], [0, 0, 1, 1], [], []>} : vector<8x8xf32>, vector<8x8xf32>, vector<8x8xf32> -> vector<8x8xf32>
    %152 = vector.broadcast %150 : vector<8x1xf32> to vector<8x8xf32>
    %153 = arith.mulf %151, %152 : vector<8x8xf32>
    %154 = vector.shape_cast %153 : vector<8x8xf32> to vector<8x1x8xf32>
    %c0_63 = arith.constant 0 : index
    %c1_64 = arith.constant 1 : index
    %c8_65 = arith.constant 8 : index
    %155 = vector.load %arg21[%c0_63, %c1_64, %c8_65] : memref<8x2x32xf32, #tpu.memory_space<vmem>>, vector<8x1x8xf32>
    tpu.vector_store %arg21[%c0_63, %c1_64, %c8_65], %154 {strides = array<i32>} : memref<8x2x32xf32, #tpu.memory_space<vmem>>, vector<8x1x8xf32>,
    %156 = vector.extract_strided_slice %21 {offsets = [0, 1, 16], sizes = [8, 1, 8], strides = [1, 1, 1]} : vector<8x2x32xf32> to vector<8x1x8xf32>
    %157 = vector.shape_cast %156 : vector<8x1x8xf32> to vector<8x8xf32>
    %cst_66 = arith.constant 0.353553385 : f32
    %158 = vector.broadcast %cst_66 : f32 to vector<8x8xf32>
    %159 = arith.mulf %157, %158 : vector<8x8xf32>
    %160 = vector.extract_strided_slice %22 {offsets = [0, 1, 16], sizes = [8, 1, 8], strides = [1, 1, 1]} : vector<8x2x32xf32> to vector<8x1x8xf32>
    %161 = vector.shape_cast %160 : vector<8x1x8xf32> to vector<8x8xf32>
    %162 = vector.extract_strided_slice %23 {offsets = [0, 1, 16], sizes = [8, 1, 8], strides = [1, 1, 1]} : vector<8x2x32xf32> to vector<8x1x8xf32>
    %163 = vector.shape_cast %162 : vector<8x1x8xf32> to vector<8x8xf32>
    %cst_67 = arith.constant dense<0.000000e+00> : vector<8x8xf32>
    %164 = tpu.matmul %159, %161, %cst_67 {dimension_numbers = #tpu.dot_dimension_numbers<[1], [1], [0], [0], [0, 0, 1, 0], [], []>} : vector<8x8xf32>, vector<8x8xf32>, vector<8x8xf32> -> vector<8x8xf32>
    %cst_68 = arith.constant dense<0xFF800000> : vector<8xf32>
    %165 = vector.multi_reduction <maximumf>, %164, %cst_68 [1] : vector<8x8xf32> to vector<8xf32>
    %166 = vector.shape_cast %165 : vector<8xf32> to vector<8x1xf32>
    %167 = vector.broadcast %166 : vector<8x1xf32> to vector<8x8xf32>
    %168 = arith.subf %164, %167 : vector<8x8xf32>
    %169 = math.exp %168 : vector<8x8xf32>
    %cst_69 = arith.constant dense<0.000000e+00> : vector<8xf32>
    %170 = vector.multi_reduction <add>, %169, %cst_69 [1] : vector<8x8xf32> to vector<8xf32>
    %171 = vector.shape_cast %170 : vector<8xf32> to vector<8x1xf32>
    %172 = tpu.reciprocal %171 {approx = true} : vector<8x1xf32> -> vector<8x1xf32>
    %cst_70 = arith.constant dense<0.000000e+00> : vector<8x8xf32>
    %173 = tpu.matmul %169, %163, %cst_70 {dimension_numbers = #tpu.dot_dimension_numbers<[1], [0], [0], [1], [0, 0, 1, 1], [], []>} : vector<8x8xf32>, vector<8x8xf32>, vector<8x8xf32> -> vector<8x8xf32>
    %174 = vector.broadcast %172 : vector<8x1xf32> to vector<8x8xf32>
    %175 = arith.mulf %173, %174 : vector<8x8xf32>
    %176 = vector.shape_cast %175 : vector<8x8xf32> to vector<8x1x8xf32>
    %c0_71 = arith.constant 0 : index
    %c1_72 = arith.constant 1 : index
    %c16_73 = arith.constant 16 : index
    %177 = vector.load %arg21[%c0_71, %c1_72, %c16_73] : memref<8x2x32xf32, #tpu.memory_space<vmem>>, vector<8x1x8xf32>
    tpu.vector_store %arg21[%c0_71, %c1_72, %c16_73], %176 {strides = array<i32>} : memref<8x2x32xf32, #tpu.memory_space<vmem>>, vector<8x1x8xf32>,
    %178 = vector.extract_strided_slice %21 {offsets = [0, 1, 24], sizes = [8, 1, 8], strides = [1, 1, 1]} : vector<8x2x32xf32> to vector<8x1x8xf32>
    %179 = vector.shape_cast %178 : vector<8x1x8xf32> to vector<8x8xf32>
    %cst_74 = arith.constant 0.353553385 : f32
    %180 = vector.broadcast %cst_74 : f32 to vector<8x8xf32>
    %181 = arith.mulf %179, %180 : vector<8x8xf32>
    %182 = vector.extract_strided_slice %22 {offsets = [0, 1, 24], sizes = [8, 1, 8], strides = [1, 1, 1]} : vector<8x2x32xf32> to vector<8x1x8xf32>
    %183 = vector.shape_cast %182 : vector<8x1x8xf32> to vector<8x8xf32>
    %184 = vector.extract_strided_slice %23 {offsets = [0, 1, 24], sizes = [8, 1, 8], strides = [1, 1, 1]} : vector<8x2x32xf32> to vector<8x1x8xf32>
    %185 = vector.shape_cast %184 : vector<8x1x8xf32> to vector<8x8xf32>
    %cst_75 = arith.constant dense<0.000000e+00> : vector<8x8xf32>
    %186 = tpu.matmul %181, %183, %cst_75 {dimension_numbers = #tpu.dot_dimension_numbers<[1], [1], [0], [0], [0, 0, 1, 0], [], []>} : vector<8x8xf32>, vector<8x8xf32>, vector<8x8xf32> -> vector<8x8xf32>
    %cst_76 = arith.constant dense<0xFF800000> : vector<8xf32>
    %187 = vector.multi_reduction <maximumf>, %186, %cst_76 [1] : vector<8x8xf32> to vector<8xf32>
    %188 = vector.shape_cast %187 : vector<8xf32> to vector<8x1xf32>
    %189 = vector.broadcast %188 : vector<8x1xf32> to vector<8x8xf32>
    %190 = arith.subf %186, %189 : vector<8x8xf32>
    %191 = math.exp %190 : vector<8x8xf32>
    %cst_77 = arith.constant dense<0.000000e+00> : vector<8xf32>
    %192 = vector.multi_reduction <add>, %191, %cst_77 [1] : vector<8x8xf32> to vector<8xf32>
    %193 = vector.shape_cast %192 : vector<8xf32> to vector<8x1xf32>
    %194 = tpu.reciprocal %193 {approx = true} : vector<8x1xf32> -> vector<8x1xf32>
    %cst_78 = arith.constant dense<0.000000e+00> : vector<8x8xf32>
    %195 = tpu.matmul %191, %185, %cst_78 {dimension_numbers = #tpu.dot_dimension_numbers<[1], [0], [0], [1], [0, 0, 1, 1], [], []>} : vector<8x8xf32>, vector<8x8xf32>, vector<8x8xf32> -> vector<8x8xf32>
    %196 = vector.broadcast %194 : vector<8x1xf32> to vector<8x8xf32>
    %197 = arith.mulf %195, %196 : vector<8x8xf32>
    %198 = vector.shape_cast %197 : vector<8x8xf32> to vector<8x1x8xf32>
    %c0_79 = arith.constant 0 : index
    %c1_80 = arith.constant 1 : index
    %c24_81 = arith.constant 24 : index
    %199 = vector.load %arg21[%c0_79, %c1_80, %c24_81] : memref<8x2x32xf32, #tpu.memory_space<vmem>>, vector<8x1x8xf32>
    tpu.vector_store %arg21[%c0_79, %c1_80, %c24_81], %198 {strides = array<i32>} : memref<8x2x32xf32, #tpu.memory_space<vmem>>, vector<8x1x8xf32>,
    %c0_82 = arith.constant 0 : index
    %c0_83 = arith.constant 0 : index
    %c0_84 = arith.constant 0 : index
    %200 = vector.load %arg21[%c0_82, %c0_83, %c0_84] : memref<8x2x32xf32, #tpu.memory_space<vmem>>, vector<8x2x32xf32>
    %201 = vector.shape_cast %200 : vector<8x2x32xf32> to vector<16x32xf32>
    %c0_85 = arith.constant 0 : index
    %c0_86 = arith.constant 0 : index
    %202 = vector.load %arg10[%c0_85, %c0_86] : memref<32x32xf32, #tpu.memory_space<vmem>>, vector<32x32xf32>
    %cst_87 = arith.constant dense<0.000000e+00> : vector<16x32xf32>
    %203 = tpu.matmul %201, %202, %cst_87 {dimension_numbers = #tpu.dot_dimension_numbers<[1], [0], [0], [1], [0, 0, 1, 1], [], []>} : vector<16x32xf32>, vector<32x32xf32>, vector<16x32xf32> -> vector<16x32xf32>
    %c0_88 = arith.constant 0 : index
    %c0_89 = arith.constant 0 : index
    %204 = vector.load %arg11[%c0_88, %c0_89] : memref<1x32xf32, #tpu.memory_space<vmem>>, vector<1x32xf32>
    %205 = vector.broadcast %204 : vector<1x32xf32> to vector<16x32xf32>
    %206 = arith.addf %203, %205 : vector<16x32xf32>
    %207 = arith.addf %1, %206 : vector<16x32xf32>
    %cst_90 = arith.constant dense<0.000000e+00> : vector<16xf32>
    %208 = vector.multi_reduction <add>, %207, %cst_90 [1] : vector<16x32xf32> to vector<16xf32>
    %209 = vector.shape_cast %208 : vector<16xf32> to vector<16x1xf32>
    %cst_91 = arith.constant 3.200000e+01 : f32
    %210 = vector.broadcast %cst_91 : f32 to vector<16x1xf32>
    %211 = arith.divf %209, %210 : vector<16x1xf32>
    %212 = vector.broadcast %211 : vector<16x1xf32> to vector<16x32xf32>
    %213 = arith.subf %207, %212 : vector<16x32xf32>
    %214 = arith.mulf %213, %213 : vector<16x32xf32>
    %cst_92 = arith.constant dense<0.000000e+00> : vector<16xf32>
    %215 = vector.multi_reduction <add>, %214, %cst_92 [1] : vector<16x32xf32> to vector<16xf32>
    %216 = vector.shape_cast %215 : vector<16xf32> to vector<16x1xf32>
    %cst_93 = arith.constant 3.200000e+01 : f32
    %217 = vector.broadcast %cst_93 : f32 to vector<16x1xf32>
    %218 = arith.divf %216, %217 : vector<16x1xf32>
    %219 = vector.broadcast %211 : vector<16x1xf32> to vector<16x32xf32>
    %220 = arith.subf %207, %219 : vector<16x32xf32>
    %cst_94 = arith.constant 9.99999974E-6 : f32
    %221 = vector.broadcast %cst_94 : f32 to vector<16x1xf32>
    %222 = arith.addf %218, %221 : vector<16x1xf32>
    %223 = math.rsqrt %222 : vector<16x1xf32>
    %224 = vector.broadcast %223 : vector<16x1xf32> to vector<16x32xf32>
    %225 = arith.mulf %220, %224 : vector<16x32xf32>
    %c0_95 = arith.constant 0 : index
    %c0_96 = arith.constant 0 : index
    %226 = vector.load %arg16[%c0_95, %c0_96] : memref<1x32xf32, #tpu.memory_space<vmem>>, vector<1x32xf32>
    %227 = vector.broadcast %226 : vector<1x32xf32> to vector<16x32xf32>
    %228 = arith.mulf %225, %227 : vector<16x32xf32>
    %c0_97 = arith.constant 0 : index
    %c0_98 = arith.constant 0 : index
    %229 = vector.load %arg17[%c0_97, %c0_98] : memref<1x32xf32, #tpu.memory_space<vmem>>, vector<1x32xf32>
    %230 = vector.broadcast %229 : vector<1x32xf32> to vector<16x32xf32>
    %231 = arith.addf %228, %230 : vector<16x32xf32>
    %c0_99 = arith.constant 0 : index
    %c0_100 = arith.constant 0 : index
    %232 = vector.load %arg12[%c0_99, %c0_100] : memref<32x64xf32, #tpu.memory_space<vmem>>, vector<32x64xf32>
    %cst_101 = arith.constant dense<0.000000e+00> : vector<16x64xf32>
    %233 = tpu.matmul %231, %232, %cst_101 {dimension_numbers = #tpu.dot_dimension_numbers<[1], [0], [0], [1], [0, 0, 1, 1], [], []>} : vector<16x32xf32>, vector<32x64xf32>, vector<16x64xf32> -> vector<16x64xf32>
    %c0_102 = arith.constant 0 : index
    %c0_103 = arith.constant 0 : index
    %234 = vector.load %arg13[%c0_102, %c0_103] : memref<1x64xf32, #tpu.memory_space<vmem>>, vector<1x64xf32>
    %235 = vector.broadcast %234 : vector<1x64xf32> to vector<16x64xf32>
    %236 = arith.addf %233, %235 : vector<16x64xf32>
    %cst_104 = arith.constant 0.000000e+00 : f32
    %237 = vector.broadcast %cst_104 : f32 to vector<16x64xf32>
    %238 = arith.maximumf %236, %237 : vector<16x64xf32>
    %c0_105 = arith.constant 0 : index
    %c0_106 = arith.constant 0 : index
    %239 = vector.load %arg14[%c0_105, %c0_106] : memref<64x32xf32, #tpu.memory_space<vmem>>, vector<64x32xf32>
    %cst_107 = arith.constant dense<0.000000e+00> : vector<16x32xf32>
    %240 = tpu.matmul %238, %239, %cst_107 {dimension_numbers = #tpu.dot_dimension_numbers<[1], [0], [0], [1], [0, 0, 1, 1], [], []>} : vector<16x64xf32>, vector<64x32xf32>, vector<16x32xf32> -> vector<16x32xf32>
    %c0_108 = arith.constant 0 : index
    %c0_109 = arith.constant 0 : index
    %241 = vector.load %arg15[%c0_108, %c0_109] : memref<1x32xf32, #tpu.memory_space<vmem>>, vector<1x32xf32>
    %242 = vector.broadcast %241 : vector<1x32xf32> to vector<16x32xf32>
    %243 = arith.addf %240, %242 : vector<16x32xf32>
    %244 = arith.addf %231, %243 : vector<16x32xf32>
    %cst_110 = arith.constant dense<0.000000e+00> : vector<16xf32>
    %245 = vector.multi_reduction <add>, %244, %cst_110 [1] : vector<16x32xf32> to vector<16xf32>
    %246 = vector.shape_cast %245 : vector<16xf32> to vector<16x1xf32>
    %cst_111 = arith.constant 3.200000e+01 : f32
    %247 = vector.broadcast %cst_111 : f32 to vector<16x1xf32>
    %248 = arith.divf %246, %247 : vector<16x1xf32>
    %249 = vector.broadcast %248 : vector<16x1xf32> to vector<16x32xf32>
    %250 = arith.subf %244, %249 : vector<16x32xf32>
    %251 = arith.mulf %250, %250 : vector<16x32xf32>
    %cst_112 = arith.constant dense<0.000000e+00> : vector<16xf32>
    %252 = vector.multi_reduction <add>, %251, %cst_112 [1] : vector<16x32xf32> to vector<16xf32>
    %253 = vector.shape_cast %252 : vector<16xf32> to vector<16x1xf32>
    %cst_113 = arith.constant 3.200000e+01 : f32
    %254 = vector.broadcast %cst_113 : f32 to vector<16x1xf32>
    %255 = arith.divf %253, %254 : vector<16x1xf32>
    %256 = vector.broadcast %248 : vector<16x1xf32> to vector<16x32xf32>
    %257 = arith.subf %244, %256 : vector<16x32xf32>
    %cst_114 = arith.constant 9.99999974E-6 : f32
    %258 = vector.broadcast %cst_114 : f32 to vector<16x1xf32>
    %259 = arith.addf %255, %258 : vector<16x1xf32>
    %260 = math.rsqrt %259 : vector<16x1xf32>
    %261 = vector.broadcast %260 : vector<16x1xf32> to vector<16x32xf32>
    %262 = arith.mulf %257, %261 : vector<16x32xf32>
    %c0_115 = arith.constant 0 : index
    %c0_116 = arith.constant 0 : index
    %263 = vector.load %arg18[%c0_115, %c0_116] : memref<1x32xf32, #tpu.memory_space<vmem>>, vector<1x32xf32>
    %264 = vector.broadcast %263 : vector<1x32xf32> to vector<16x32xf32>
    %265 = arith.mulf %262, %264 : vector<16x32xf32>
    %c0_117 = arith.constant 0 : index
    %c0_118 = arith.constant 0 : index
    %266 = vector.load %arg19[%c0_117, %c0_118] : memref<1x32xf32, #tpu.memory_space<vmem>>, vector<1x32xf32>
    %267 = vector.broadcast %266 : vector<1x32xf32> to vector<16x32xf32>
    %268 = arith.addf %265, %267 : vector<16x32xf32>
    %269 = vector.shape_cast %268 : vector<16x32xf32> to vector<8x2x32xf32>
    %c0_119 = arith.constant 0 : index
    %c0_120 = arith.constant 0 : index
    %c0_121 = arith.constant 0 : index
    %270 = vector.load %arg20[%c0_119, %c0_120, %c0_121] : memref<8x2x32xf32, #tpu.memory_space<vmem>>, vector<8x2x32xf32>
    tpu.vector_store %arg20[%c0_119, %c0_120, %c0_121], %269 {strides = array<i32>} : memref<8x2x32xf32, #tpu.memory_space<vmem>>, vector<8x2x32xf32>,
    return
  }
  func.func @transform_0(%arg0: i32) -> (i32, i32, i32) {
    %c0_i32 = arith.constant 0 : i32
    %c0_i32_0 = arith.constant 0 : i32
    %c0_i32_1 = arith.constant 0 : i32
    return %c0_i32, %arg0, %c0_i32_0 : i32, i32, i32
  }
  func.func @transform_1(%arg0: i32) -> (i32, i32, i32) {
    %c0_i32 = arith.constant 0 : i32
    %c0_i32_0 = arith.constant 0 : i32
    %c0_i32_1 = arith.constant 0 : i32
    return %c0_i32, %arg0, %c0_i32_0 : i32, i32, i32
  }
  func.func @transform_2(%arg0: i32) -> (i32, i32, i32) {
    %c0_i32 = arith.constant 0 : i32
    %c0_i32_0 = arith.constant 0 : i32
    %c0_i32_1 = arith.constant 0 : i32
    return %c0_i32, %arg0, %c0_i32_0 : i32, i32, i32
  }
  func.func @transform_3(%arg0: i32) -> (i32, i32) {
    %c0_i32 = arith.constant 0 : i32
    %c0_i32_0 = arith.constant 0 : i32
    %c0_i32_1 = arith.constant 0 : i32
    return %c0_i32, %c0_i32_0 : i32, i32
  }
  func.func @transform_4(%arg0: i32) -> (i32, i32) {
    %c0_i32 = arith.constant 0 : i32
    %c0_i32_0 = arith.constant 0 : i32
    %c0_i32_1 = arith.constant 0 : i32
    return %c0_i32, %c0_i32_0 : i32, i32
  }
  func.func @transform_5(%arg0: i32) -> (i32, i32) {
    %c0_i32 = arith.constant 0 : i32
    %c0_i32_0 = arith.constant 0 : i32
    %c0_i32_1 = arith.constant 0 : i32
    return %c0_i32, %c0_i32_0 : i32, i32
  }
  func.func @transform_6(%arg0: i32) -> (i32, i32) {
    %c0_i32 = arith.constant 0 : i32
    %c0_i32_0 = arith.constant 0 : i32
    %c0_i32_1 = arith.constant 0 : i32
    return %c0_i32, %c0_i32_0 : i32, i32
  }
  func.func @transform_7(%arg0: i32) -> (i32, i32) {
    %c0_i32 = arith.constant 0 : i32
    %c0_i32_0 = arith.constant 0 : i32
    %c0_i32_1 = arith.constant 0 : i32
    return %c0_i32, %c0_i32_0 : i32, i32
  }
  func.func @transform_8(%arg0: i32) -> (i32, i32) {
    %c0_i32 = arith.constant 0 : i32
    %c0_i32_0 = arith.constant 0 : i32
    %c0_i32_1 = arith.constant 0 : i32
    return %c0_i32, %c0_i32_0 : i32, i32
  }
  func.func @transform_9(%arg0: i32) -> (i32, i32) {
    %c0_i32 = arith.constant 0 : i32
    %c0_i32_0 = arith.constant 0 : i32
    %c0_i32_1 = arith.constant 0 : i32
    return %c0_i32, %c0_i32_0 : i32, i32
  }
  func.func @transform_10(%arg0: i32) -> (i32, i32) {
    %c0_i32 = arith.constant 0 : i32
    %c0_i32_0 = arith.constant 0 : i32
    %c0_i32_1 = arith.constant 0 : i32
    return %c0_i32, %c0_i32_0 : i32, i32
  }
  func.func @transform_11(%arg0: i32) -> (i32, i32) {
    %c0_i32 = arith.constant 0 : i32
    %c0_i32_0 = arith.constant 0 : i32
    %c0_i32_1 = arith.constant 0 : i32
    return %c0_i32, %c0_i32_0 : i32, i32
  }
  func.func @transform_12(%arg0: i32) -> (i32, i32) {
    %c0_i32 = arith.constant 0 : i32
    %c0_i32_0 = arith.constant 0 : i32
    %c0_i32_1 = arith.constant 0 : i32
    return %c0_i32, %c0_i32_0 : i32, i32
  }
  func.func @transform_13(%arg0: i32) -> (i32, i32) {
    %c0_i32 = arith.constant 0 : i32
    %c0_i32_0 = arith.constant 0 : i32
    %c0_i32_1 = arith.constant 0 : i32
    return %c0_i32, %c0_i32_0 : i32, i32
  }
  func.func @transform_14(%arg0: i32) -> (i32, i32) {
    %c0_i32 = arith.constant 0 : i32
    %c0_i32_0 = arith.constant 0 : i32
    %c0_i32_1 = arith.constant 0 : i32
    return %c0_i32, %c0_i32_0 : i32, i32
  }
  func.func @transform_15(%arg0: i32) -> (i32, i32) {
    %c0_i32 = arith.constant 0 : i32
    %c0_i32_0 = arith.constant 0 : i32
    %c0_i32_1 = arith.constant 0 : i32
    return %c0_i32, %c0_i32_0 : i32, i32
  }
  func.func @transform_16(%arg0: i32) -> (i32, i32) {
    %c0_i32 = arith.constant 0 : i32
    %c0_i32_0 = arith.constant 0 : i32
    %c0_i32_1 = arith.constant 0 : i32
    return %c0_i32, %c0_i32_0 : i32, i32
  }
  func.func @transform_17(%arg0: i32) -> (i32, i32) {
    %c0_i32 = arith.constant 0 : i32
    %c0_i32_0 = arith.constant 0 : i32
    %c0_i32_1 = arith.constant 0 : i32
    return %c0_i32, %c0_i32_0 : i32, i32
  }
  func.func @transform_18(%arg0: i32) -> (i32, i32) {
    %c0_i32 = arith.constant 0 : i32
    %c0_i32_0 = arith.constant 0 : i32
    %c0_i32_1 = arith.constant 0 : i32
    return %c0_i32, %c0_i32_0 : i32, i32
  }
  func.func @transform_19(%arg0: i32) -> (i32, i32, i32) {
    %c0_i32 = arith.constant 0 : i32
    %c0_i32_0 = arith.constant 0 : i32
    %c0_i32_1 = arith.constant 0 : i32
    return %c0_i32, %arg0, %c0_i32_0 : i32, i32, i32
  }
}

</mosaic_0001>

<llo_original>
// kernel: tpu_custom_call.1
$region0: #{tpu_custom_call.1}
  #allocation0 [shape = 'u32[]', space=smem, size = 0x4, offset = 0x4, fixed_abs, tag = 'smem constant byte address 0x4 - core index']
  #allocation1 [shape = 'u32[72,128]{1,0:T(1,128)}', space=vmem, size = 0x9000, scoped, tag = 'internal scratch']
  #allocation2 [shape = 'f32[8,2,32]{2,1,0:T(2,128)}', space=vmem, size = 0x2000, scoped, tag = 'scratch operand']
  %s0 = inlined_call_operand.hbm [shape: f32[8,2,32], index: 0, kind: input, shape index: {}]
  %s1 = inlined_call_operand.hbm [shape: f32[8,2,32], index: 1, kind: input, shape index: {}]
  %s2 = inlined_call_operand.hbm [shape: f32[8,2,32], index: 2, kind: input, shape index: {}]
  %s3 = inlined_call_operand.vmem [shape: f32[32,32], index: 3, kind: input, shape index: {}]
  %s4 = inlined_call_operand.vmem [shape: f32[1,32], index: 4, kind: input, shape index: {}]
  %s5 = inlined_call_operand.vmem [shape: f32[32,32], index: 5, kind: input, shape index: {}]
  %s6 = inlined_call_operand.vmem [shape: f32[1,32], index: 6, kind: input, shape index: {}]
  %s7 = inlined_call_operand.vmem [shape: f32[32,32], index: 7, kind: input, shape index: {}]
  %s8 = inlined_call_operand.vmem [shape: f32[1,32], index: 8, kind: input, shape index: {}]
  %s9 = inlined_call_operand.hbm [shape: f32[32,32], index: 9, kind: input, shape index: {}]
  %s10 = inlined_call_operand.vmem [shape: f32[1,32], index: 10, kind: input, shape index: {}]
  %s11 = inlined_call_operand.hbm [shape: f32[32,64], index: 11, kind: input, shape index: {}]
  %s12 = inlined_call_operand.vmem [shape: f32[1,64], index: 12, kind: input, shape index: {}]
  %s13 = inlined_call_operand.vmem [shape: f32[64,32], index: 13, kind: input, shape index: {}]
  %s14 = inlined_call_operand.vmem [shape: f32[1,32], index: 14, kind: input, shape index: {}]
  %s15 = inlined_call_operand.vmem [shape: f32[1,32], index: 15, kind: input, shape index: {}]
  %s16 = inlined_call_operand.vmem [shape: f32[1,32], index: 16, kind: input, shape index: {}]
  %s17 = inlined_call_operand.vmem [shape: f32[1,32], index: 17, kind: input, shape index: {}]
  %s18 = inlined_call_operand.vmem [shape: f32[1,32], index: 18, kind: input, shape index: {}]
  %s19 = inlined_call_operand.hbm [shape: f32[8,2,32], index: 19, kind: output, shape index: {}]
  %s20 = sld [smem:[#allocation0]]
  $region106: #{tpu_custom_call.1} parent=0
    _
  %s22 = ssub.s32 1, %s20
  %s23 = scalar_select 0, %s22, %s20
  $region1: #{tpu_custom_call.1} parent=0
    #allocation3 [shape = 'u8[8192]{0}', space=vmem, size = 0x2000, scoped, tag = 'input window, operand 0, single buffered']
    #allocation4 [shape = 's32[1]{0}', space=sflag, size = 0x4, scoped, tag = 'scoped memory for tpu_custom_call.1']
    #allocation5 [shape = 's32[1]{0}', space=sflag, size = 0x4, scoped, tag = 'scoped memory for tpu_custom_call.1']
    #allocation6 [shape = 'u8[8192]{0}', space=vmem, size = 0x2000, scoped, tag = 'input window, operand 1, single buffered']
    #allocation7 [shape = 's32[1]{0}', space=sflag, size = 0x4, scoped, tag = 'scoped memory for tpu_custom_call.1']
    #allocation8 [shape = 'u8[8192]{0}', space=vmem, size = 0x2000, scoped, tag = 'input window, operand 2, single buffered']
    #allocation9 [shape = 'u8[16384]{0}', space=vmem, size = 0x4000, scoped, tag = 'input window, operand 9, single buffered']
    #allocation10 [shape = 's32[1]{0}', space=sflag, size = 0x4, scoped, tag = 'scoped memory for tpu_custom_call.1']
    #allocation11 [shape = 'u8[16384]{0}', space=vmem, size = 0x4000, scoped, tag = 'input window, operand 11, single buffered']
    #allocation12 [shape = 'u8[8192]{0}', space=vmem, size = 0x2000, scoped, tag = 'output window, operand 0, single buffered']
    %24 = vsyncpa [#allocation4], 0
    %25 = vsyncpa [#allocation7], 0
    %26 = vsyncpa [#allocation10], 0
    %27 = vsyncpa [#allocation5], 0
    // Predicated region
    $region2: #{tpu_custom_call.1} parent=1 // pred_check
      _
    $region3: #{tpu_custom_call.1} parent=1 // pred_check_branch
      %29 = sbr.rel (0) target = $region5
    $region4: #{tpu_custom_call.1} parent=1 // pred_region
      %31 = vsyncadd [#allocation4], 0
      %s32 = sshll.u32 %s0, 4
      %s33 = int_to_ptr.hbm [resolvable:$true] %s32
      %s34 = sshll.u32 [#allocation3], 4
      %s35 = int_to_ptr.vmem [resolvable:$true] %s34
      %40 = dma.hbm_to_vmem [thread:$0]  %s33, 256, %s35, [#allocation4], 32, 32, 2
    $region5: #{tpu_custom_call.1} parent=1 // pred_fallthru
      _
    // Predicated region
    $region6: #{tpu_custom_call.1} parent=1 // pred_check
      _
    $region7: #{tpu_custom_call.1} parent=1 // pred_check_branch
      %42 = sbr.rel (0) target = $region9
    $region8: #{tpu_custom_call.1} parent=1 // pred_region
      %44 = vsyncadd [#allocation7], 0
      %s45 = sshll.u32 %s1, 4
      %s46 = int_to_ptr.hbm [resolvable:$true] %s45
      %s47 = sshll.u32 [#allocation6], 4
      %s48 = int_to_ptr.vmem [resolvable:$true] %s47
      %53 = dma.hbm_to_vmem [thread:$0]  %s46, 256, %s48, [#allocation7], 32, 32, 2
    $region9: #{tpu_custom_call.1} parent=1 // pred_fallthru
      _
    // Predicated region
    $region10: #{tpu_custom_call.1} parent=1 // pred_check
      _
    $region11: #{tpu_custom_call.1} parent=1 // pred_check_branch
      %55 = sbr.rel (0) target = $region13
    $region12: #{tpu_custom_call.1} parent=1 // pred_region
      %57 = vsyncadd [#allocation7], 0
      %s58 = sshll.u32 %s2, 4
      %s59 = int_to_ptr.hbm [resolvable:$true] %s58
      %s60 = sshll.u32 [#allocation8], 4
      %s61 = int_to_ptr.vmem [resolvable:$true] %s60
      %66 = dma.hbm_to_vmem [thread:$0]  %s59, 256, %s61, [#allocation7], 32, 32, 2
    $region13: #{tpu_custom_call.1} parent=1 // pred_fallthru
      _
    // Predicated region
    $region14: #{tpu_custom_call.1} parent=1 // pred_check
      _
    $region15: #{tpu_custom_call.1} parent=1 // pred_check_branch
      %68 = sbr.rel (0) target = $region17
    $region16: #{tpu_custom_call.1} parent=1 // pred_region
      _
    $region17: #{tpu_custom_call.1} parent=1 // pred_fallthru
      _
    // Predicated region
    $region18: #{tpu_custom_call.1} parent=1 // pred_check
      _
    $region19: #{tpu_custom_call.1} parent=1 // pred_check_branch
      %70 = sbr.rel (0) target = $region21
    $region20: #{tpu_custom_call.1} parent=1 // pred_region
      _
    $region21: #{tpu_custom_call.1} parent=1 // pred_fallthru
      _
    // Predicated region
    $region22: #{tpu_custom_call.1} parent=1 // pred_check
      _
    $region23: #{tpu_custom_call.1} parent=1 // pred_check_branch
      %72 = sbr.rel (0) target = $region25
    $region24: #{tpu_custom_call.1} parent=1 // pred_region
      _
    $region25: #{tpu_custom_call.1} parent=1 // pred_fallthru
      _
    // Predicated region
    $region26: #{tpu_custom_call.1} parent=1 // pred_check
      _
    $region27: #{tpu_custom_call.1} parent=1 // pred_check_branch
      %74 = sbr.rel (0) target = $region29
    $region28: #{tpu_custom_call.1} parent=1 // pred_region
      _
    $region29: #{tpu_custom_call.1} parent=1 // pred_fallthru
      _
    // Predicated region
    $region30: #{tpu_custom_call.1} parent=1 // pred_check
      _
    $region31: #{tpu_custom_call.1} parent=1 // pred_check_branch
      %76 = sbr.rel (0) target = $region33
    $region32: #{tpu_custom_call.1} parent=1 // pred_region
      _
    $region33: #{tpu_custom_call.1} parent=1 // pred_fallthru
      _
    // Predicated region
    $region34: #{tpu_custom_call.1} parent=1 // pred_check
      _
    $region35: #{tpu_custom_call.1} parent=1 // pred_check_branch
      %78 = sbr.rel (0) target = $region37
    $region36: #{tpu_custom_call.1} parent=1 // pred_region
      _
    $region37: #{tpu_custom_call.1} parent=1 // pred_fallthru
      _
    // Predicated region
    $region38: #{tpu_custom_call.1} parent=1 // pred_check
      _
    $region39: #{tpu_custom_call.1} parent=1 // pred_check_branch
      %80 = sbr.rel (0) target = $region41
    $region40: #{tpu_custom_call.1} parent=1 // pred_region
      %82 = vsyncadd [#allocation10], 0
      %s83 = sshll.u32 %s9, 4
      %s84 = int_to_ptr.hbm [resolvable:$true] %s83
      %s85 = sshll.u32 [#allocation9], 4
      %s86 = int_to_ptr.vmem [resolvable:$true] %s85
      %91 = dma.hbm_to_vmem [thread:$0]  %s84, 512, %s86, [#allocation10], 128, 128, 8
    $region41: #{tpu_custom_call.1} parent=1 // pred_fallthru
      _
    // Predicated region
    $region42: #{tpu_custom_call.1} parent=1 // pred_check
      _
    $region43: #{tpu_custom_call.1} parent=1 // pred_check_branch
      %93 = sbr.rel (0) target = $region45
    $region44: #{tpu_custom_call.1} parent=1 // pred_region
      _
    $region45: #{tpu_custom_call.1} parent=1 // pred_fallthru
      _
    // Predicated region
    $region46: #{tpu_custom_call.1} parent=1 // pred_check
      _
    $region47: #{tpu_custom_call.1} parent=1 // pred_check_branch
      %95 = sbr.rel (0) target = $region49
    $region48: #{tpu_custom_call.1} parent=1 // pred_region
      %97 = vsyncadd [#allocation10], 0
      %s98 = sshll.u32 %s11, 4
      %s99 = int_to_ptr.hbm [resolvable:$true] %s98
      %s100 = sshll.u32 [#allocation11], 4
      %s101 = int_to_ptr.vmem [resolvable:$true] %s100
      %106 = dma.hbm_to_vmem [thread:$0]  %s99, 512, %s101, [#allocation10], 128, 128, 8
    $region49: #{tpu_custom_call.1} parent=1 // pred_fallthru
      _
    // Predicated region
    $region50: #{tpu_custom_call.1} parent=1 // pred_check
      _
    $region51: #{tpu_custom_call.1} parent=1 // pred_check_branch
      %108 = sbr.rel (0) target = $region53
    $region52: #{tpu_custom_call.1} parent=1 // pred_region
      _
    $region53: #{tpu_custom_call.1} parent=1 // pred_fallthru
      _
    // Predicated region
    $region54: #{tpu_custom_call.1} parent=1 // pred_check
      _
    $region55: #{tpu_custom_call.1} parent=1 // pred_check_branch
      %110 = sbr.rel (0) target = $region57
    $region56: #{tpu_custom_call.1} parent=1 // pred_region
      _
    $region57: #{tpu_custom_call.1} parent=1 // pred_fallthru
      _
    // Predicated region
    $region58: #{tpu_custom_call.1} parent=1 // pred_check
      _
    $region59: #{tpu_custom_call.1} parent=1 // pred_check_branch
      %112 = sbr.rel (0) target = $region61
    $region60: #{tpu_custom_call.1} parent=1 // pred_region
      _
    $region61: #{tpu_custom_call.1} parent=1 // pred_fallthru
      _
    // Predicated region
    $region62: #{tpu_custom_call.1} parent=1 // pred_check
      _
    $region63: #{tpu_custom_call.1} parent=1 // pred_check_branch
      %114 = sbr.rel (0) target = $region65
    $region64: #{tpu_custom_call.1} parent=1 // pred_region
      _
    $region65: #{tpu_custom_call.1} parent=1 // pred_fallthru
      _
    // Predicated region
    $region66: #{tpu_custom_call.1} parent=1 // pred_check
      _
    $region67: #{tpu_custom_call.1} parent=1 // pred_check_branch
      %116 = sbr.rel (0) target = $region69
    $region68: #{tpu_custom_call.1} parent=1 // pred_region
      _
    $region69: #{tpu_custom_call.1} parent=1 // pred_fallthru
      _
    // Predicated region
    $region70: #{tpu_custom_call.1} parent=1 // pred_check
      _
    $region71: #{tpu_custom_call.1} parent=1 // pred_check_branch
      %118 = sbr.rel (0) target = $region73
    $region72: #{tpu_custom_call.1} parent=1 // pred_region
      _
    $region73: #{tpu_custom_call.1} parent=1 // pred_fallthru
      _
    // Predicated region
    $region74: #{tpu_custom_call.1} parent=1 // pred_check
      _
    $region75: #{tpu_custom_call.1} parent=1 // pred_check_branch
      %120 = sbr.rel (0) target = $region77
    $region76: #{tpu_custom_call.1} parent=1 // pred_region
      _
    $region77: #{tpu_custom_call.1} parent=1 // pred_fallthru
      _
    // Predicated region
    $region78: #{tpu_custom_call.1} parent=1 // pred_check
      _
    $region79: #{tpu_custom_call.1} parent=1 // pred_check_branch
      %122 = sbr.rel (0) target = $region81
    $region80: #{tpu_custom_call.1} parent=1 // pred_region
      %124 = dma.done [#allocation4], 256
    $region81: #{tpu_custom_call.1} parent=1 // pred_fallthru
      _
    // Predicated region
    $region82: #{tpu_custom_call.1} parent=1 // pred_check
      _
    $region83: #{tpu_custom_call.1} parent=1 // pred_check_branch
      %126 = sbr.rel (0) target = $region85
    $region84: #{tpu_custom_call.1} parent=1 // pred_region
      %128 = dma.done [#allocation7], 256
    $region85: #{tpu_custom_call.1} parent=1 // pred_fallthru
      _
    // Predicated region
    $region86: #{tpu_custom_call.1} parent=1 // pred_check
      _
    $region87: #{tpu_custom_call.1} parent=1 // pred_check_branch
      %130 = sbr.rel (0) target = $region89
    $region88: #{tpu_custom_call.1} parent=1 // pred_region
      %132 = dma.done [#allocation7], 256
    $region89: #{tpu_custom_call.1} parent=1 // pred_fallthru
      _
    // Predicated region
    $region90: #{tpu_custom_call.1} parent=1 // pred_check
      _
    $region91: #{tpu_custom_call.1} parent=1 // pred_check_branch
      %134 = sbr.rel (0) target = $region93
    $region92: #{tpu_custom_call.1} parent=1 // pred_region
      %136 = dma.done [#allocation10], 512
    $region93: #{tpu_custom_call.1} parent=1 // pred_fallthru
      _
    // Predicated region
    $region94: #{tpu_custom_call.1} parent=1 // pred_check
      _
    $region95: #{tpu_custom_call.1} parent=1 // pred_check_branch
      %138 = sbr.rel (0) target = $region97
    $region96: #{tpu_custom_call.1} parent=1 // pred_region
      %140 = dma.done [#allocation10], 512
    $region97: #{tpu_custom_call.1} parent=1 // pred_fallthru
      _
    %v141 = vld [vmem:[#allocation3] sm:$0x3]
    %v142 = vld [vmem:[#allocation3 + $0x2] sm:$0x3]
    %v143 = vld [vmem:[#allocation3 + $0x4] sm:$0x3]
    %v144 = vld [vmem:[#allocation3 + $0x6] sm:$0x3]
    %v145 = vld [vmem:[#allocation3 + $0x8] sm:$0x3]
    %v146 = vld [vmem:[#allocation3 + $0xa] sm:$0x3]
    %v147 = vld [vmem:[#allocation3 + $0xc] sm:$0x3]
    %v148 = vld [vmem:[#allocation3 + $0xe] sm:$0x3]
    %v149 = vld [vmem:[#allocation6] sm:$0x3]
    %v150 = vld [vmem:[#allocation6 + $0x2] sm:$0x3]
    %v151 = vld [vmem:[#allocation6 + $0x4] sm:$0x3]
    %v152 = vld [vmem:[#allocation6 + $0x6] sm:$0x3]
    %v153 = vld [vmem:[#allocation6 + $0x8] sm:$0x3]
    %v154 = vld [vmem:[#allocation6 + $0xa] sm:$0x3]
    %v155 = vld [vmem:[#allocation6 + $0xc] sm:$0x3]
    %v156 = vld [vmem:[#allocation6 + $0xe] sm:$0x3]
    %v157 = vld [vmem:[#allocation8] sm:$0x3]
    %v158 = vld [vmem:[#allocation8 + $0x2] sm:$0x3]
    %v159 = vld [vmem:[#allocation8 + $0x4] sm:$0x3]
    %v160 = vld [vmem:[#allocation8 + $0x6] sm:$0x3]
    %v161 = vld [vmem:[#allocation8 + $0x8] sm:$0x3]
    %v162 = vld [vmem:[#allocation8 + $0xa] sm:$0x3]
    %v163 = vld [vmem:[#allocation8 + $0xc] sm:$0x3]
    %v164 = vld [vmem:[#allocation8 + $0xe] sm:$0x3]
    %v165 = vld [vmem:[%s3] sm:$0xff]
    %v166 = vld [vmem:[%s3 + $0x8] sm:$0xff]
    %v167 = vld [vmem:[%s3 + $0x10] sm:$0xff]
    %v168 = vld [vmem:[%s3 + $0x18] sm:$0xff]
    %v169 = vld [vmem:[%s4] sm:$0x1]
    %v171 = vperm.slane %v169, 0
    %181 = vst [vmem:[#allocation1] ss:$4 sm:$0xff] %v141
    %s182 = scalar_lea.vmem [#allocation1], 1
    %183 = vst [vmem:[%s182] ss:$4 sm:$0xff] %v142
    %s184 = scalar_lea.vmem [#allocation1], 2
    %185 = vst [vmem:[%s184] ss:$4 sm:$0xff] %v143
    %s186 = scalar_lea.vmem [#allocation1], 3
    %187 = vst [vmem:[%s186] ss:$4 sm:$0xff] %v144
    %s188 = scalar_lea.vmem [#allocation1], 32
    %189 = vst [vmem:[%s188] ss:$4 sm:$0xff] %v145
    %s190 = scalar_lea.vmem [#allocation1], 33
    %191 = vst [vmem:[%s190] ss:$4 sm:$0xff] %v146
    %s192 = scalar_lea.vmem [#allocation1], 34
    %193 = vst [vmem:[%s192] ss:$4 sm:$0xff] %v147
    %s194 = scalar_lea.vmem [#allocation1], 35
    %195 = vst [vmem:[%s194] ss:$4 sm:$0xff] %v148
    %v196 = vld.sshfl [vmem:[#allocation1] sm:$0xff pattern:$0x73625140]
    %v197 = vld.sshfl [vmem:[#allocation1 + $0x20] sm:$0xff pattern:$0x73625140]
    %vm198 = vcmask 261120
    %v199 = vsel %vm198, %v196, 0
    %v201 = vsel %vm198, %v197, 0
    %203 = vmatpush.msra.mxu0 0.0
    %204 = vmatpush.msra.mxu0 0.0
    %205 = vmatpush.msra.mxu0 0.0
    %206 = vmatpush.msra.mxu0 0.0
    %207 = vmatpush.msra.mxu0 0.0
    %208 = vmatpush.msra.mxu0 0.0
    %209 = vmatpush.msra.mxu0 0.0
    %210 = vmatpush.msra.mxu0 0.0
    %211 = vmatpush.msra.mxu0 0.0
    %212 = vmatpush.msra.mxu0 0.0
    %213 = vmatpush.msra.mxu0 0.0
    %214 = vmatpush.msra.mxu0 0.0
    %215 = vmatpush.msra.mxu0 %v168
    %216 = vmatpush.msra.mxu0 %v167
    %217 = vmatpush.msra.mxu0 %v166
    %218 = vmatpush.msra.mxu0 %v165
    %219 = vmatmul.f32.gmra.mxu0 %v199
    %v220 = vpop.f32.mrf.mxu0
    %v221 = vadd.f32 %v171, %v220
    %222 = vmatmul.f32.gmra.mxu0 %v201
    %v223 = vpop.f32.mrf.mxu0
    %v224 = vadd.f32 %v171, %v223
    %225 = vdwg.mxu0
    %v226 = vld [vmem:[%s5] sm:$0xff]
    %v227 = vld [vmem:[%s5 + $0x8] sm:$0xff]
    %v228 = vld [vmem:[%s5 + $0x10] sm:$0xff]
    %v229 = vld [vmem:[%s5 + $0x18] sm:$0xff]
    %v230 = vld [vmem:[%s6] sm:$0x1]
    %v232 = vperm.slane %v230, 0
    %242 = vst [vmem:[#allocation1] ss:$4 sm:$0xff] %v149
    %s243 = scalar_lea.vmem [#allocation1], 1
    %244 = vst [vmem:[%s243] ss:$4 sm:$0xff] %v150
    %s245 = scalar_lea.vmem [#allocation1], 2
    %246 = vst [vmem:[%s245] ss:$4 sm:$0xff] %v151
    %s247 = scalar_lea.vmem [#allocation1], 3
    %248 = vst [vmem:[%s247] ss:$4 sm:$0xff] %v152
    %s249 = scalar_lea.vmem [#allocation1], 32
    %250 = vst [vmem:[%s249] ss:$4 sm:$0xff] %v153
    %s251 = scalar_lea.vmem [#allocation1], 33
    %252 = vst [vmem:[%s251] ss:$4 sm:$0xff] %v154
    %s253 = scalar_lea.vmem [#allocation1], 34
    %254 = vst [vmem:[%s253] ss:$4 sm:$0xff] %v155
    %s255 = scalar_lea.vmem [#allocation1], 35
    %256 = vst [vmem:[%s255] ss:$4 sm:$0xff] %v156
    %v257 = vld.sshfl [vmem:[#allocation1] sm:$0xff pattern:$0x73625140]
    %v258 = vld.sshfl [vmem:[#allocation1 + $0x20] sm:$0xff pattern:$0x73625140]
    %v259 = vsel %vm198, %v257, 0
    %v261 = vsel %vm198, %v258, 0
    %263 = vmatpush.msra.mxu0 0.0
    %264 = vmatpush.msra.mxu0 0.0
    %265 = vmatpush.msra.mxu0 0.0
    %266 = vmatpush.msra.mxu0 0.0
    %267 = vmatpush.msra.mxu0 0.0
    %268 = vmatpush.msra.mxu0 0.0
    %269 = vmatpush.msra.mxu0 0.0
    %270 = vmatpush.msra.mxu0 0.0
    %271 = vmatpush.msra.mxu0 0.0
    %272 = vmatpush.msra.mxu0 0.0
    %273 = vmatpush.msra.mxu0 0.0
    %274 = vmatpush.msra.mxu0 0.0
    %275 = vmatpush.msra.mxu0 %v229
    %276 = vmatpush.msra.mxu0 %v228
    %277 = vmatpush.msra.mxu0 %v227
    %278 = vmatpush.msra.mxu0 %v226
    %279 = vmatmul.f32.gmra.mxu0 %v259
    %v280 = vpop.f32.mrf.mxu0
    %v281 = vadd.f32 %v232, %v280
    %282 = vmatmul.f32.gmra.mxu0 %v261
    %v283 = vpop.f32.mrf.mxu0
    %v284 = vadd.f32 %v232, %v283
    %285 = vdwg.mxu0
    %v286 = vld [vmem:[%s7] sm:$0xff]
    %v287 = vld [vmem:[%s7 + $0x8] sm:$0xff]
    %v288 = vld [vmem:[%s7 + $0x10] sm:$0xff]
    %v289 = vld [vmem:[%s7 + $0x18] sm:$0xff]
    %v290 = vld [vmem:[%s8] sm:$0x1]
    %v292 = vperm.slane %v290, 0
    %302 = vst [vmem:[#allocation1] ss:$4 sm:$0xff] %v157
    %s303 = scalar_lea.vmem [#allocation1], 1
    %304 = vst [vmem:[%s303] ss:$4 sm:$0xff] %v158
    %s305 = scalar_lea.vmem [#allocation1], 2
    %306 = vst [vmem:[%s305] ss:$4 sm:$0xff] %v159
    %s307 = scalar_lea.vmem [#allocation1], 3
    %308 = vst [vmem:[%s307] ss:$4 sm:$0xff] %v160
    %s309 = scalar_lea.vmem [#allocation1], 32
    %310 = vst [vmem:[%s309] ss:$4 sm:$0xff] %v161
    %s311 = scalar_lea.vmem [#allocation1], 33
    %312 = vst [vmem:[%s311] ss:$4 sm:$0xff] %v162
    %s313 = scalar_lea.vmem [#allocation1], 34
    %314 = vst [vmem:[%s313] ss:$4 sm:$0xff] %v163
    %s315 = scalar_lea.vmem [#allocation1], 35
    %316 = vst [vmem:[%s315] ss:$4 sm:$0xff] %v164
    %v317 = vld.sshfl [vmem:[#allocation1] sm:$0xff pattern:$0x73625140]
    %v318 = vld.sshfl [vmem:[#allocation1 + $0x20] sm:$0xff pattern:$0x73625140]
    %v319 = vsel %vm198, %v317, 0
    %v321 = vsel %vm198, %v318, 0
    %323 = vmatpush.msra.mxu0 0.0
    %324 = vmatpush.msra.mxu0 0.0
    %325 = vmatpush.msra.mxu0 0.0
    %326 = vmatpush.msra.mxu0 0.0
    %327 = vmatpush.msra.mxu0 0.0
    %328 = vmatpush.msra.mxu0 0.0
    %329 = vmatpush.msra.mxu0 0.0
    %330 = vmatpush.msra.mxu0 0.0
    %331 = vmatpush.msra.mxu0 0.0
    %332 = vmatpush.msra.mxu0 0.0
    %333 = vmatpush.msra.mxu0 0.0
    %334 = vmatpush.msra.mxu0 0.0
    %335 = vmatpush.msra.mxu0 %v289
    %336 = vmatpush.msra.mxu0 %v288
    %337 = vmatpush.msra.mxu0 %v287
    %338 = vmatpush.msra.mxu0 %v286
    %339 = vmatmul.f32.gmra.mxu0 %v319
    %v340 = vpop.f32.mrf.mxu0
    %v341 = vadd.f32 %v292, %v340
    %342 = vmatmul.f32.gmra.mxu0 %v321
    %v343 = vpop.f32.mrf.mxu0
    %v344 = vadd.f32 %v292, %v343
    %345 = vdwg.mxu0
    %v348 = vrot.slane %v221, 2
    %v349 = vrot.slane %v221, 4
    %v350 = vrot.slane %v221, 6
    %v351 = vrot.slane %v224, 2
    %v352 = vrot.slane %v224, 4
    %v353 = vrot.slane %v224, 6
    %v362 = vrot.slane %v281, 2
    %v363 = vrot.slane %v281, 4
    %v364 = vrot.slane %v281, 6
    %v365 = vrot.slane %v284, 2
    %v366 = vrot.slane %v284, 4
    %v367 = vrot.slane %v284, 6
    %v370 = vrot.slane %v341, 2
    %v371 = vrot.slane %v341, 4
    %v372 = vrot.slane %v341, 6
    %v373 = vrot.slane %v344, 2
    %v374 = vrot.slane %v344, 4
    %v375 = vrot.slane %v344, 6
    %v376 = vmul.f32 %v221, 0.35355338
    %v377 = vmul.f32 %v348, 0.35355338
    %v378 = vmul.f32 %v349, 0.35355338
    %v379 = vmul.f32 %v350, 0.35355338
    %v380 = vmul.f32 %v224, 0.35355338
    %v381 = vmul.f32 %v351, 0.35355338
    %v382 = vmul.f32 %v352, 0.35355338
    %v383 = vmul.f32 %v353, 0.35355338
    %v392 = vperm.slane %v376, 0
    %v393 = vperm.slane %v377, 0
    %v394 = vperm.slane %v378, 0
    %v395 = vperm.slane %v379, 0
    %v396 = vperm.slane %v380, 0
    %v397 = vperm.slane %v381, 0
    %v398 = vperm.slane %v382, 0
    %v399 = vperm.slane %v383, 0
    %vm400 = vcmask 1041409
    %v401 = vsel %vm400, %v393, %v392
    %vm402 = vcmask 1042434
    %v403 = vsel %vm402, %v394, %v401
    %vm404 = vcmask 1043459
    %v405 = vsel %vm404, %v395, %v403
    %vm406 = vcmask 1044484
    %v407 = vsel %vm406, %v396, %v405
    %vm408 = vcmask 1045509
    %v409 = vsel %vm408, %v397, %v407
    %vm410 = vcmask 1046534
    %v411 = vsel %vm410, %v398, %v409
    %vm412 = vcmask 1047559
    %v413 = vsel %vm412, %v399, %v411
    %v414 = vperm.slane %v281, 0
    %v415 = vperm.slane %v362, 0
    %v416 = vperm.slane %v363, 0
    %v417 = vperm.slane %v364, 0
    %v418 = vperm.slane %v284, 0
    %v419 = vperm.slane %v365, 0
    %v420 = vperm.slane %v366, 0
    %v421 = vperm.slane %v367, 0
    %v422 = vsel %vm400, %v415, %v414
    %v423 = vsel %vm402, %v416, %v422
    %v424 = vsel %vm404, %v417, %v423
    %v425 = vsel %vm406, %v418, %v424
    %v426 = vsel %vm408, %v419, %v425
    %v427 = vsel %vm410, %v420, %v426
    %v428 = vsel %vm412, %v421, %v427
    %vm429 = vcmask 64512
    %v430 = vsel %vm429, %v413, 0
    %v432 = vsel %vm429, %v428, 0
    %434 = vmatpush.xpose.msra.mxu0 0.0
    %435 = vmatpush.xpose.msra.mxu0 0.0
    %436 = vmatpush.xpose.msra.mxu0 0.0
    %437 = vmatpush.xpose.msra.mxu0 0.0
    %438 = vmatpush.xpose.msra.mxu0 0.0
    %439 = vmatpush.xpose.msra.mxu0 0.0
    %440 = vmatpush.xpose.msra.mxu0 0.0
    %441 = vmatpush.xpose.msra.mxu0 0.0
    %442 = vmatpush.xpose.msra.mxu0 0.0
    %443 = vmatpush.xpose.msra.mxu0 0.0
    %444 = vmatpush.xpose.msra.mxu0 0.0
    %445 = vmatpush.xpose.msra.mxu0 0.0
    %446 = vmatpush.xpose.msra.mxu0 0.0
    %447 = vmatpush.xpose.msra.mxu0 0.0
    %448 = vmatpush.xpose.msra.mxu0 0.0
    %449 = vmatpush.xpose.msra.mxu0 %v432
    %450 = vmatmul.f32.gmra.mxu0 %v430
    %v451 = vpop.f32.mrf.mxu0
    %v452 = vadd.f32 0.0, %v451
    %453 = vdwg.mxu0
    %v454 = vsel %vm429, %v452, -inf
    %455 = vmax.xlane.f32.xlu0 %v454
    %v456 = vpop.xlane.xlu0 %455
    %v457 = vsub.f32 %v452, %v456
    %v458 = vmul.f32 %v457, 1.442695
    %v459 = vpow.pop %v458
    %v460 = vsel %vm429, %v459, 0.0
    %461 = vadd.xlane.f32.xlu0 %v460
    %v462 = vpop.xlane.xlu0 %461
    %v463 = vrcp.pop %v462
    %v464 = vperm.slane %v341, 0
    %v465 = vperm.slane %v370, 0
    %v466 = vperm.slane %v371, 0
    %v467 = vperm.slane %v372, 0
    %v468 = vperm.slane %v344, 0
    %v469 = vperm.slane %v373, 0
    %v470 = vperm.slane %v374, 0
    %v471 = vperm.slane %v375, 0
    %v472 = vsel %vm400, %v465, %v464
    %v473 = vsel %vm402, %v466, %v472
    %v474 = vsel %vm404, %v467, %v473
    %v475 = vsel %vm406, %v468, %v474
    %v476 = vsel %vm408, %v469, %v475
    %v477 = vsel %vm410, %v470, %v476
    %v478 = vsel %vm412, %v471, %v477
    %v481 = vsel %vm429, %v459, 0
    %483 = vmatpush.msra.mxu0 0.0
    %484 = vmatpush.msra.mxu0 0.0
    %485 = vmatpush.msra.mxu0 0.0
    %486 = vmatpush.msra.mxu0 0.0
    %487 = vmatpush.msra.mxu0 0.0
    %488 = vmatpush.msra.mxu0 0.0
    %489 = vmatpush.msra.mxu0 0.0
    %490 = vmatpush.msra.mxu0 0.0
    %491 = vmatpush.msra.mxu0 0.0
    %492 = vmatpush.msra.mxu0 0.0
    %493 = vmatpush.msra.mxu0 0.0
    %494 = vmatpush.msra.mxu0 0.0
    %495 = vmatpush.msra.mxu0 0.0
    %496 = vmatpush.msra.mxu0 0.0
    %497 = vmatpush.msra.mxu0 0.0
    %498 = vmatpush.msra.mxu0 %v478
    %499 = vmatmul.f32.gmra.mxu0 %v481
    %v500 = vpop.f32.mrf.mxu0
    %v501 = vadd.f32 0.0, %v500
    %502 = vdwg.mxu0
    %v503 = vmul.f32 %v501, %v463
    %v505 = vrot.slane %v503, 1
    %v506 = vrot.slane %v503, 2
    %v507 = vrot.slane %v503, 3
    %v508 = vrot.slane %v503, 4
    %v509 = vrot.slane %v503, 5
    %v510 = vrot.slane %v503, 6
    %v511 = vrot.slane %v503, 7
    %vm519 = vcmask 57344
    %520 = vst.msk [vmem:[#allocation2] sm:$0x1] %vm519, %v503
    %521 = vst.msk [vmem:[#allocation2 + $0x2] sm:$0x1] %vm519, %v505
    %522 = vst.msk [vmem:[#allocation2 + $0x4] sm:$0x1] %vm519, %v506
    %523 = vst.msk [vmem:[#allocation2 + $0x6] sm:$0x1] %vm519, %v507
    %524 = vst.msk [vmem:[#allocation2 + $0x8] sm:$0x1] %vm519, %v508
    %525 = vst.msk [vmem:[#allocation2 + $0xa] sm:$0x1] %vm519, %v509
    %526 = vst.msk [vmem:[#allocation2 + $0xc] sm:$0x1] %vm519, %v510
    %527 = vst.msk [vmem:[#allocation2 + $0xe] sm:$0x1] %vm519, %v511
    %528 = vrot.lane.b32.xlu0 %v413, 120
    %v529 = vpop.permute.xlu0 %528
    %530 = vrot.lane.b32.xlu0 %v428, 120
    %v531 = vpop.permute.xlu0 %530
    %v532 = vsel %vm429, %v529, 0
    %v534 = vsel %vm429, %v531, 0
    %536 = vmatpush.xpose.msra.mxu0 0.0
    %537 = vmatpush.xpose.msra.mxu0 0.0
    %538 = vmatpush.xpose.msra.mxu0 0.0
    %539 = vmatpush.xpose.msra.mxu0 0.0
    %540 = vmatpush.xpose.msra.mxu0 0.0
    %541 = vmatpush.xpose.msra.mxu0 0.0
    %542 = vmatpush.xpose.msra.mxu0 0.0
    %543 = vmatpush.xpose.msra.mxu0 0.0
    %544 = vmatpush.xpose.msra.mxu0 0.0
    %545 = vmatpush.xpose.msra.mxu0 0.0
    %546 = vmatpush.xpose.msra.mxu0 0.0
    %547 = vmatpush.xpose.msra.mxu0 0.0
    %548 = vmatpush.xpose.msra.mxu0 0.0
    %549 = vmatpush.xpose.msra.mxu0 0.0
    %550 = vmatpush.xpose.msra.mxu0 0.0
    %551 = vmatpush.xpose.msra.mxu0 %v534
    %552 = vmatmul.f32.gmra.mxu0 %v532
    %v553 = vpop.f32.mrf.mxu0
    %v554 = vadd.f32 0.0, %v553
    %555 = vdwg.mxu0
    %v556 = vsel %vm429, %v554, -inf
    %557 = vmax.xlane.f32.xlu0 %v556
    %v558 = vpop.xlane.xlu0 %557
    %v559 = vsub.f32 %v554, %v558
    %v560 = vmul.f32 %v559, 1.442695
    %v561 = vpow.pop %v560
    %v562 = vsel %vm429, %v561, 0.0
    %563 = vadd.xlane.f32.xlu0 %v562
    %v564 = vpop.xlane.xlu0 %563
    %v565 = vrcp.pop %v564
    %566 = vrot.lane.b32.xlu0 %v478, 120
    %v567 = vpop.permute.xlu0 %566
    %v570 = vsel %vm429, %v561, 0
    %572 = vmatpush.msra.mxu0 0.0
    %573 = vmatpush.msra.mxu0 0.0
    %574 = vmatpush.msra.mxu0 0.0
    %575 = vmatpush.msra.mxu0 0.0
    %576 = vmatpush.msra.mxu0 0.0
    %577 = vmatpush.msra.mxu0 0.0
    %578 = vmatpush.msra.mxu0 0.0
    %579 = vmatpush.msra.mxu0 0.0
    %580 = vmatpush.msra.mxu0 0.0
    %581 = vmatpush.msra.mxu0 0.0
    %582 = vmatpush.msra.mxu0 0.0
    %583 = vmatpush.msra.mxu0 0.0
    %584 = vmatpush.msra.mxu0 0.0
    %585 = vmatpush.msra.mxu0 0.0
    %586 = vmatpush.msra.mxu0 0.0
    %587 = vmatpush.msra.mxu0 %v567
    %588 = vmatmul.f32.gmra.mxu0 %v570
    %v589 = vpop.f32.mrf.mxu0
    %v590 = vadd.f32 0.0, %v589
    %591 = vdwg.mxu0
    %v592 = vmul.f32 %v590, %v565
    %v594 = vrot.slane %v592, 1
    %v595 = vrot.slane %v592, 2
    %v596 = vrot.slane %v592, 3
    %v597 = vrot.slane %v592, 4
    %v598 = vrot.slane %v592, 5
    %v599 = vrot.slane %v592, 6
    %v600 = vrot.slane %v592, 7
    %v601 = vperm.slane %v592, 0
    %v602 = vperm.slane %v594, 0
    %v603 = vperm.slane %v595, 0
    %v604 = vperm.slane %v596, 0
    %v605 = vperm.slane %v597, 0
    %v606 = vperm.slane %v598, 0
    %v607 = vperm.slane %v599, 0
    %v608 = vperm.slane %v600, 0
    %609 = vrot.lane.b32.xlu0 %v601, 8
    %v610 = vpop.permute.xlu0 %609
    %611 = vrot.lane.b32.xlu0 %v602, 8
    %v612 = vpop.permute.xlu0 %611
    %613 = vrot.lane.b32.xlu0 %v603, 8
    %v614 = vpop.permute.xlu0 %613
    %615 = vrot.lane.b32.xlu0 %v604, 8
    %v616 = vpop.permute.xlu0 %615
    %617 = vrot.lane.b32.xlu0 %v605, 8
    %v618 = vpop.permute.xlu0 %617
    %619 = vrot.lane.b32.xlu0 %v606, 8
    %v620 = vpop.permute.xlu0 %619
    %621 = vrot.lane.b32.xlu0 %v607, 8
    %v622 = vpop.permute.xlu0 %621
    %623 = vrot.lane.b32.xlu0 %v608, 8
    %v624 = vpop.permute.xlu0 %623
    %vm633 = vcmask 122944
    %634 = vst.msk [vmem:[#allocation2] sm:$0x1] %vm633, %v610
    %635 = vst.msk [vmem:[#allocation2 + $0x2] sm:$0x1] %vm633, %v612
    %636 = vst.msk [vmem:[#allocation2 + $0x4] sm:$0x1] %vm633, %v614
    %637 = vst.msk [vmem:[#allocation2 + $0x6] sm:$0x1] %vm633, %v616
    %638 = vst.msk [vmem:[#allocation2 + $0x8] sm:$0x1] %vm633, %v618
    %639 = vst.msk [vmem:[#allocation2 + $0xa] sm:$0x1] %vm633, %v620
    %640 = vst.msk [vmem:[#allocation2 + $0xc] sm:$0x1] %vm633, %v622
    %641 = vst.msk [vmem:[#allocation2 + $0xe] sm:$0x1] %vm633, %v624
    %642 = vrot.lane.b32.xlu0 %v413, 112
    %v643 = vpop.permute.xlu0 %642
    %644 = vrot.lane.b32.xlu0 %v428, 112
    %v645 = vpop.permute.xlu0 %644
    %v646 = vsel %vm429, %v643, 0
    %v648 = vsel %vm429, %v645, 0
    %650 = vmatpush.xpose.msra.mxu0 0.0
    %651 = vmatpush.xpose.msra.mxu0 0.0
    %652 = vmatpush.xpose.msra.mxu0 0.0
    %653 = vmatpush.xpose.msra.mxu0 0.0
    %654 = vmatpush.xpose.msra.mxu0 0.0
    %655 = vmatpush.xpose.msra.mxu0 0.0
    %656 = vmatpush.xpose.msra.mxu0 0.0
    %657 = vmatpush.xpose.msra.mxu0 0.0
    %658 = vmatpush.xpose.msra.mxu0 0.0
    %659 = vmatpush.xpose.msra.mxu0 0.0
    %660 = vmatpush.xpose.msra.mxu0 0.0
    %661 = vmatpush.xpose.msra.mxu0 0.0
    %662 = vmatpush.xpose.msra.mxu0 0.0
    %663 = vmatpush.xpose.msra.mxu0 0.0
    %664 = vmatpush.xpose.msra.mxu0 0.0
    %665 = vmatpush.xpose.msra.mxu0 %v648
    %666 = vmatmul.f32.gmra.mxu0 %v646
    %v667 = vpop.f32.mrf.mxu0
    %v668 = vadd.f32 0.0, %v667
    %669 = vdwg.mxu0
    %v670 = vsel %vm429, %v668, -inf
    %671 = vmax.xlane.f32.xlu0 %v670
    %v672 = vpop.xlane.xlu0 %671
    %v673 = vsub.f32 %v668, %v672
    %v674 = vmul.f32 %v673, 1.442695
    %v675 = vpow.pop %v674
    %v676 = vsel %vm429, %v675, 0.0
    %677 = vadd.xlane.f32.xlu0 %v676
    %v678 = vpop.xlane.xlu0 %677
    %v679 = vrcp.pop %v678
    %680 = vrot.lane.b32.xlu0 %v478, 112
    %v681 = vpop.permute.xlu0 %680
    %v684 = vsel %vm429, %v675, 0
    %686 = vmatpush.msra.mxu0 0.0
    %687 = vmatpush.msra.mxu0 0.0
    %688 = vmatpush.msra.mxu0 0.0
    %689 = vmatpush.msra.mxu0 0.0
    %690 = vmatpush.msra.mxu0 0.0
    %691 = vmatpush.msra.mxu0 0.0
    %692 = vmatpush.msra.mxu0 0.0
    %693 = vmatpush.msra.mxu0 0.0
    %694 = vmatpush.msra.mxu0 0.0
    %695 = vmatpush.msra.mxu0 0.0
    %696 = vmatpush.msra.mxu0 0.0
    %697 = vmatpush.msra.mxu0 0.0
    %698 = vmatpush.msra.mxu0 0.0
    %699 = vmatpush.msra.mxu0 0.0
    %700 = vmatpush.msra.mxu0 0.0
    %701 = vmatpush.msra.mxu0 %v681
    %702 = vmatmul.f32.gmra.mxu0 %v684
    %v703 = vpop.f32.mrf.mxu0
    %v704 = vadd.f32 0.0, %v703
    %705 = vdwg.mxu0
    %v706 = vmul.f32 %v704, %v679
    %v708 = vrot.slane %v706, 1
    %v709 = vrot.slane %v706, 2
    %v710 = vrot.slane %v706, 3
    %v711 = vrot.slane %v706, 4
    %v712 = vrot.slane %v706, 5
    %v713 = vrot.slane %v706, 6
    %v714 = vrot.slane %v706, 7
    %v715 = vperm.slane %v706, 0
    %v716 = vperm.slane %v708, 0
    %v717 = vperm.slane %v709, 0
    %v718 = vperm.slane %v710, 0
    %v719 = vperm.slane %v711, 0
    %v720 = vperm.slane %v712, 0
    %v721 = vperm.slane %v713, 0
    %v722 = vperm.slane %v714, 0
    %723 = vrot.lane.b32.xlu0 %v715, 16
    %v724 = vpop.permute.xlu0 %723
    %725 = vrot.lane.b32.xlu0 %v716, 16
    %v726 = vpop.permute.xlu0 %725
    %727 = vrot.lane.b32.xlu0 %v717, 16
    %v728 = vpop.permute.xlu0 %727
    %729 = vrot.lane.b32.xlu0 %v718, 16
    %v730 = vpop.permute.xlu0 %729
    %731 = vrot.lane.b32.xlu0 %v719, 16
    %v732 = vpop.permute.xlu0 %731
    %733 = vrot.lane.b32.xlu0 %v720, 16
    %v734 = vpop.permute.xlu0 %733
    %735 = vrot.lane.b32.xlu0 %v721, 16
    %v736 = vpop.permute.xlu0 %735
    %737 = vrot.lane.b32.xlu0 %v722, 16
    %v738 = vpop.permute.xlu0 %737
    %vm747 = vcmask 188544
    %748 = vst.msk [vmem:[#allocation2] sm:$0x1] %vm747, %v724
    %749 = vst.msk [vmem:[#allocation2 + $0x2] sm:$0x1] %vm747, %v726
    %750 = vst.msk [vmem:[#allocation2 + $0x4] sm:$0x1] %vm747, %v728
    %751 = vst.msk [vmem:[#allocation2 + $0x6] sm:$0x1] %vm747, %v730
    %752 = vst.msk [vmem:[#allocation2 + $0x8] sm:$0x1] %vm747, %v732
    %753 = vst.msk [vmem:[#allocation2 + $0xa] sm:$0x1] %vm747, %v734
    %754 = vst.msk [vmem:[#allocation2 + $0xc] sm:$0x1] %vm747, %v736
    %755 = vst.msk [vmem:[#allocation2 + $0xe] sm:$0x1] %vm747, %v738
    %756 = vrot.lane.b32.xlu0 %v413, 104
    %v757 = vpop.permute.xlu0 %756
    %758 = vrot.lane.b32.xlu0 %v428, 104
    %v759 = vpop.permute.xlu0 %758
    %v760 = vsel %vm429, %v757, 0
    %v762 = vsel %vm429, %v759, 0
    %764 = vmatpush.xpose.msra.mxu0 0.0
    %765 = vmatpush.xpose.msra.mxu0 0.0
    %766 = vmatpush.xpose.msra.mxu0 0.0
    %767 = vmatpush.xpose.msra.mxu0 0.0
    %768 = vmatpush.xpose.msra.mxu0 0.0
    %769 = vmatpush.xpose.msra.mxu0 0.0
    %770 = vmatpush.xpose.msra.mxu0 0.0
    %771 = vmatpush.xpose.msra.mxu0 0.0
    %772 = vmatpush.xpose.msra.mxu0 0.0
    %773 = vmatpush.xpose.msra.mxu0 0.0
    %774 = vmatpush.xpose.msra.mxu0 0.0
    %775 = vmatpush.xpose.msra.mxu0 0.0
    %776 = vmatpush.xpose.msra.mxu0 0.0
    %777 = vmatpush.xpose.msra.mxu0 0.0
    %778 = vmatpush.xpose.msra.mxu0 0.0
    %779 = vmatpush.xpose.msra.mxu0 %v762
    %780 = vmatmul.f32.gmra.mxu0 %v760
    %v781 = vpop.f32.mrf.mxu0
    %v782 = vadd.f32 0.0, %v781
    %783 = vdwg.mxu0
    %v784 = vsel %vm429, %v782, -inf
    %785 = vmax.xlane.f32.xlu0 %v784
    %v786 = vpop.xlane.xlu0 %785
    %v787 = vsub.f32 %v782, %v786
    %v788 = vmul.f32 %v787, 1.442695
    %v789 = vpow.pop %v788
    %v790 = vsel %vm429, %v789, 0.0
    %791 = vadd.xlane.f32.xlu0 %v790
    %v792 = vpop.xlane.xlu0 %791
    %v793 = vrcp.pop %v792
    %794 = vrot.lane.b32.xlu0 %v478, 104
    %v795 = vpop.permute.xlu0 %794
    %v798 = vsel %vm429, %v789, 0
    %800 = vmatpush.msra.mxu0 0.0
    %801 = vmatpush.msra.mxu0 0.0
    %802 = vmatpush.msra.mxu0 0.0
    %803 = vmatpush.msra.mxu0 0.0
    %804 = vmatpush.msra.mxu0 0.0
    %805 = vmatpush.msra.mxu0 0.0
    %806 = vmatpush.msra.mxu0 0.0
    %807 = vmatpush.msra.mxu0 0.0
    %808 = vmatpush.msra.mxu0 0.0
    %809 = vmatpush.msra.mxu0 0.0
    %810 = vmatpush.msra.mxu0 0.0
    %811 = vmatpush.msra.mxu0 0.0
    %812 = vmatpush.msra.mxu0 0.0
    %813 = vmatpush.msra.mxu0 0.0
    %814 = vmatpush.msra.mxu0 0.0
    %815 = vmatpush.msra.mxu0 %v795
    %816 = vmatmul.f32.gmra.mxu0 %v798
    %v817 = vpop.f32.mrf.mxu0
    %v818 = vadd.f32 0.0, %v817
    %819 = vdwg.mxu0
    %v820 = vmul.f32 %v818, %v793
    %v822 = vrot.slane %v820, 1
    %v823 = vrot.slane %v820, 2
    %v824 = vrot.slane %v820, 3
    %v825 = vrot.slane %v820, 4
    %v826 = vrot.slane %v820, 5
    %v827 = vrot.slane %v820, 6
    %v828 = vrot.slane %v820, 7
    %v829 = vperm.slane %v820, 0
    %v830 = vperm.slane %v822, 0
    %v831 = vperm.slane %v823, 0
    %v832 = vperm.slane %v824, 0
    %v833 = vperm.slane %v825, 0
    %v834 = vperm.slane %v826, 0
    %v835 = vperm.slane %v827, 0
    %v836 = vperm.slane %v828, 0
    %837 = vrot.lane.b32.xlu0 %v829, 24
    %v838 = vpop.permute.xlu0 %837
    %839 = vrot.lane.b32.xlu0 %v830, 24
    %v840 = vpop.permute.xlu0 %839
    %841 = vrot.lane.b32.xlu0 %v831, 24
    %v842 = vpop.permute.xlu0 %841
    %843 = vrot.lane.b32.xlu0 %v832, 24
    %v844 = vpop.permute.xlu0 %843
    %845 = vrot.lane.b32.xlu0 %v833, 24
    %v846 = vpop.permute.xlu0 %845
    %847 = vrot.lane.b32.xlu0 %v834, 24
    %v848 = vpop.permute.xlu0 %847
    %849 = vrot.lane.b32.xlu0 %v835, 24
    %v850 = vpop.permute.xlu0 %849
    %851 = vrot.lane.b32.xlu0 %v836, 24
    %v852 = vpop.permute.xlu0 %851
    %vm861 = vcmask 254144
    %862 = vst.msk [vmem:[#allocation2] sm:$0x1] %vm861, %v838
    %863 = vst.msk [vmem:[#allocation2 + $0x2] sm:$0x1] %vm861, %v840
    %864 = vst.msk [vmem:[#allocation2 + $0x4] sm:$0x1] %vm861, %v842
    %865 = vst.msk [vmem:[#allocation2 + $0x6] sm:$0x1] %vm861, %v844
    %866 = vst.msk [vmem:[#allocation2 + $0x8] sm:$0x1] %vm861, %v846
    %867 = vst.msk [vmem:[#allocation2 + $0xa] sm:$0x1] %vm861, %v848
    %868 = vst.msk [vmem:[#allocation2 + $0xc] sm:$0x1] %vm861, %v850
    %869 = vst.msk [vmem:[#allocation2 + $0xe] sm:$0x1] %vm861, %v852
    %v870 = vperm.slane %v376, 1
    %v871 = vperm.slane %v377, 1
    %v872 = vperm.slane %v378, 1
    %v873 = vperm.slane %v379, 1
    %v874 = vperm.slane %v380, 1
    %v875 = vperm.slane %v381, 1
    %v876 = vperm.slane %v382, 1
    %v877 = vperm.slane %v383, 1
    %v878 = vsel %vm400, %v871, %v870
    %v879 = vsel %vm402, %v872, %v878
    %v880 = vsel %vm404, %v873, %v879
    %v881 = vsel %vm406, %v874, %v880
    %v882 = vsel %vm408, %v875, %v881
    %v883 = vsel %vm410, %v876, %v882
    %v884 = vsel %vm412, %v877, %v883
    %v885 = vperm.slane %v281, 1
    %v886 = vperm.slane %v362, 1
    %v887 = vperm.slane %v363, 1
    %v888 = vperm.slane %v364, 1
    %v889 = vperm.slane %v284, 1
    %v890 = vperm.slane %v365, 1
    %v891 = vperm.slane %v366, 1
    %v892 = vperm.slane %v367, 1
    %v893 = vsel %vm400, %v886, %v885
    %v894 = vsel %vm402, %v887, %v893
    %v895 = vsel %vm404, %v888, %v894
    %v896 = vsel %vm406, %v889, %v895
    %v897 = vsel %vm408, %v890, %v896
    %v898 = vsel %vm410, %v891, %v897
    %v899 = vsel %vm412, %v892, %v898
    %v900 = vsel %vm429, %v884, 0
    %v902 = vsel %vm429, %v899, 0
    %904 = vmatpush.xpose.msra.mxu0 0.0
    %905 = vmatpush.xpose.msra.mxu0 0.0
    %906 = vmatpush.xpose.msra.mxu0 0.0
    %907 = vmatpush.xpose.msra.mxu0 0.0
    %908 = vmatpush.xpose.msra.mxu0 0.0
    %909 = vmatpush.xpose.msra.mxu0 0.0
    %910 = vmatpush.xpose.msra.mxu0 0.0
    %911 = vmatpush.xpose.msra.mxu0 0.0
    %912 = vmatpush.xpose.msra.mxu0 0.0
    %913 = vmatpush.xpose.msra.mxu0 0.0
    %914 = vmatpush.xpose.msra.mxu0 0.0
    %915 = vmatpush.xpose.msra.mxu0 0.0
    %916 = vmatpush.xpose.msra.mxu0 0.0
    %917 = vmatpush.xpose.msra.mxu0 0.0
    %918 = vmatpush.xpose.msra.mxu0 0.0
    %919 = vmatpush.xpose.msra.mxu0 %v902
    %920 = vmatmul.f32.gmra.mxu0 %v900
    %v921 = vpop.f32.mrf.mxu0
    %v922 = vadd.f32 0.0, %v921
    %923 = vdwg.mxu0
    %v924 = vsel %vm429, %v922, -inf
    %925 = vmax.xlane.f32.xlu0 %v924
    %v926 = vpop.xlane.xlu0 %925
    %v927 = vsub.f32 %v922, %v926
    %v928 = vmul.f32 %v927, 1.442695
    %v929 = vpow.pop %v928
    %v930 = vsel %vm429, %v929, 0.0
    %931 = vadd.xlane.f32.xlu0 %v930
    %v932 = vpop.xlane.xlu0 %931
    %v933 = vrcp.pop %v932
    %v934 = vperm.slane %v341, 1
    %v935 = vperm.slane %v370, 1
    %v936 = vperm.slane %v371, 1
    %v937 = vperm.slane %v372, 1
    %v938 = vperm.slane %v344, 1
    %v939 = vperm.slane %v373, 1
    %v940 = vperm.slane %v374, 1
    %v941 = vperm.slane %v375, 1
    %v942 = vsel %vm400, %v935, %v934
    %v943 = vsel %vm402, %v936, %v942
    %v944 = vsel %vm404, %v937, %v943
    %v945 = vsel %vm406, %v938, %v944
    %v946 = vsel %vm408, %v939, %v945
    %v947 = vsel %vm410, %v940, %v946
    %v948 = vsel %vm412, %v941, %v947
    %v951 = vsel %vm429, %v929, 0
    %953 = vmatpush.msra.mxu0 0.0
    %954 = vmatpush.msra.mxu0 0.0
    %955 = vmatpush.msra.mxu0 0.0
    %956 = vmatpush.msra.mxu0 0.0
    %957 = vmatpush.msra.mxu0 0.0
    %958 = vmatpush.msra.mxu0 0.0
    %959 = vmatpush.msra.mxu0 0.0
    %960 = vmatpush.msra.mxu0 0.0
    %961 = vmatpush.msra.mxu0 0.0
    %962 = vmatpush.msra.mxu0 0.0
    %963 = vmatpush.msra.mxu0 0.0
    %964 = vmatpush.msra.mxu0 0.0
    %965 = vmatpush.msra.mxu0 0.0
    %966 = vmatpush.msra.mxu0 0.0
    %967 = vmatpush.msra.mxu0 0.0
    %968 = vmatpush.msra.mxu0 %v948
    %969 = vmatmul.f32.gmra.mxu0 %v951
    %v970 = vpop.f32.mrf.mxu0
    %v971 = vadd.f32 0.0, %v970
    %972 = vdwg.mxu0
    %v973 = vmul.f32 %v971, %v933
    %v975 = vrot.slane %v973, 1
    %v976 = vrot.slane %v973, 2
    %v977 = vrot.slane %v973, 3
    %v978 = vrot.slane %v973, 4
    %v979 = vrot.slane %v973, 5
    %v980 = vrot.slane %v973, 6
    %v981 = vrot.slane %v973, 7
    %989 = vst.msk [vmem:[#allocation2 + $0x1] sm:$0x1] %vm519, %v973
    %990 = vst.msk [vmem:[#allocation2 + $0x3] sm:$0x1] %vm519, %v975
    %991 = vst.msk [vmem:[#allocation2 + $0x5] sm:$0x1] %vm519, %v976
    %992 = vst.msk [vmem:[#allocation2 + $0x7] sm:$0x1] %vm519, %v977
    %993 = vst.msk [vmem:[#allocation2 + $0x9] sm:$0x1] %vm519, %v978
    %994 = vst.msk [vmem:[#allocation2 + $0xb] sm:$0x1] %vm519, %v979
    %995 = vst.msk [vmem:[#allocation2 + $0xd] sm:$0x1] %vm519, %v980
    %996 = vst.msk [vmem:[#allocation2 + $0xf] sm:$0x1] %vm519, %v981
    %997 = vrot.lane.b32.xlu0 %v884, 120
    %v998 = vpop.permute.xlu0 %997
    %999 = vrot.lane.b32.xlu0 %v899, 120
    %v1000 = vpop.permute.xlu0 %999
    %v1001 = vsel %vm429, %v998, 0
    %v1003 = vsel %vm429, %v1000, 0
    %1005 = vmatpush.xpose.msra.mxu0 0.0
    %1006 = vmatpush.xpose.msra.mxu0 0.0
    %1007 = vmatpush.xpose.msra.mxu0 0.0
    %1008 = vmatpush.xpose.msra.mxu0 0.0
    %1009 = vmatpush.xpose.msra.mxu0 0.0
    %1010 = vmatpush.xpose.msra.mxu0 0.0
    %1011 = vmatpush.xpose.msra.mxu0 0.0
    %1012 = vmatpush.xpose.msra.mxu0 0.0
    %1013 = vmatpush.xpose.msra.mxu0 0.0
    %1014 = vmatpush.xpose.msra.mxu0 0.0
    %1015 = vmatpush.xpose.msra.mxu0 0.0
    %1016 = vmatpush.xpose.msra.mxu0 0.0
    %1017 = vmatpush.xpose.msra.mxu0 0.0
    %1018 = vmatpush.xpose.msra.mxu0 0.0
    %1019 = vmatpush.xpose.msra.mxu0 0.0
    %1020 = vmatpush.xpose.msra.mxu0 %v1003
    %1021 = vmatmul.f32.gmra.mxu0 %v1001
    %v1022 = vpop.f32.mrf.mxu0
    %v1023 = vadd.f32 0.0, %v1022
    %1024 = vdwg.mxu0
    %v1025 = vsel %vm429, %v1023, -inf
    %1026 = vmax.xlane.f32.xlu0 %v1025
    %v1027 = vpop.xlane.xlu0 %1026
    %v1028 = vsub.f32 %v1023, %v1027
    %v1029 = vmul.f32 %v1028, 1.442695
    %v1030 = vpow.pop %v1029
    %v1031 = vsel %vm429, %v1030, 0.0
    %1032 = vadd.xlane.f32.xlu0 %v1031
    %v1033 = vpop.xlane.xlu0 %1032
    %v1034 = vrcp.pop %v1033
    %1035 = vrot.lane.b32.xlu0 %v948, 120
    %v1036 = vpop.permute.xlu0 %1035
    %v1039 = vsel %vm429, %v1030, 0
    %1041 = vmatpush.msra.mxu0 0.0
    %1042 = vmatpush.msra.mxu0 0.0
    %1043 = vmatpush.msra.mxu0 0.0
    %1044 = vmatpush.msra.mxu0 0.0
    %1045 = vmatpush.msra.mxu0 0.0
    %1046 = vmatpush.msra.mxu0 0.0
    %1047 = vmatpush.msra.mxu0 0.0
    %1048 = vmatpush.msra.mxu0 0.0
    %1049 = vmatpush.msra.mxu0 0.0
    %1050 = vmatpush.msra.mxu0 0.0
    %1051 = vmatpush.msra.mxu0 0.0
    %1052 = vmatpush.msra.mxu0 0.0
    %1053 = vmatpush.msra.mxu0 0.0
    %1054 = vmatpush.msra.mxu0 0.0
    %1055 = vmatpush.msra.mxu0 0.0
    %1056 = vmatpush.msra.mxu0 %v1036
    %1057 = vmatmul.f32.gmra.mxu0 %v1039
    %v1058 = vpop.f32.mrf.mxu0
    %v1059 = vadd.f32 0.0, %v1058
    %1060 = vdwg.mxu0
    %v1061 = vmul.f32 %v1059, %v1034
    %v1063 = vrot.slane %v1061, 1
    %v1064 = vrot.slane %v1061, 2
    %v1065 = vrot.slane %v1061, 3
    %v1066 = vrot.slane %v1061, 4
    %v1067 = vrot.slane %v1061, 5
    %v1068 = vrot.slane %v1061, 6
    %v1069 = vrot.slane %v1061, 7
    %v1070 = vperm.slane %v1061, 0
    %v1071 = vperm.slane %v1063, 0
    %v1072 = vperm.slane %v1064, 0
    %v1073 = vperm.slane %v1065, 0
    %v1074 = vperm.slane %v1066, 0
    %v1075 = vperm.slane %v1067, 0
    %v1076 = vperm.slane %v1068, 0
    %v1077 = vperm.slane %v1069, 0
    %1078 = vrot.lane.b32.xlu0 %v1070, 8
    %v1079 = vpop.permute.xlu0 %1078
    %1080 = vrot.lane.b32.xlu0 %v1071, 8
    %v1081 = vpop.permute.xlu0 %1080
    %1082 = vrot.lane.b32.xlu0 %v1072, 8
    %v1083 = vpop.permute.xlu0 %1082
    %1084 = vrot.lane.b32.xlu0 %v1073, 8
    %v1085 = vpop.permute.xlu0 %1084
    %1086 = vrot.lane.b32.xlu0 %v1074, 8
    %v1087 = vpop.permute.xlu0 %1086
    %1088 = vrot.lane.b32.xlu0 %v1075, 8
    %v1089 = vpop.permute.xlu0 %1088
    %1090 = vrot.lane.b32.xlu0 %v1076, 8
    %v1091 = vpop.permute.xlu0 %1090
    %1092 = vrot.lane.b32.xlu0 %v1077, 8
    %v1093 = vpop.permute.xlu0 %1092
    %1102 = vst.msk [vmem:[#allocation2 + $0x1] sm:$0x1] %vm633, %v1079
    %1103 = vst.msk [vmem:[#allocation2 + $0x3] sm:$0x1] %vm633, %v1081
    %1104 = vst.msk [vmem:[#allocation2 + $0x5] sm:$0x1] %vm633, %v1083
    %1105 = vst.msk [vmem:[#allocation2 + $0x7] sm:$0x1] %vm633, %v1085
    %1106 = vst.msk [vmem:[#allocation2 + $0x9] sm:$0x1] %vm633, %v1087
    %1107 = vst.msk [vmem:[#allocation2 + $0xb] sm:$0x1] %vm633, %v1089
    %1108 = vst.msk [vmem:[#allocation2 + $0xd] sm:$0x1] %vm633, %v1091
    %1109 = vst.msk [vmem:[#allocation2 + $0xf] sm:$0x1] %vm633, %v1093
    %1110 = vrot.lane.b32.xlu0 %v884, 112
    %v1111 = vpop.permute.xlu0 %1110
    %1112 = vrot.lane.b32.xlu0 %v899, 112
    %v1113 = vpop.permute.xlu0 %1112
    %v1114 = vsel %vm429, %v1111, 0
    %v1116 = vsel %vm429, %v1113, 0
    %1118 = vmatpush.xpose.msra.mxu0 0.0
    %1119 = vmatpush.xpose.msra.mxu0 0.0
    %1120 = vmatpush.xpose.msra.mxu0 0.0
    %1121 = vmatpush.xpose.msra.mxu0 0.0
    %1122 = vmatpush.xpose.msra.mxu0 0.0
    %1123 = vmatpush.xpose.msra.mxu0 0.0
    %1124 = vmatpush.xpose.msra.mxu0 0.0
    %1125 = vmatpush.xpose.msra.mxu0 0.0
    %1126 = vmatpush.xpose.msra.mxu0 0.0
    %1127 = vmatpush.xpose.msra.mxu0 0.0
    %1128 = vmatpush.xpose.msra.mxu0 0.0
    %1129 = vmatpush.xpose.msra.mxu0 0.0
    %1130 = vmatpush.xpose.msra.mxu0 0.0
    %1131 = vmatpush.xpose.msra.mxu0 0.0
    %1132 = vmatpush.xpose.msra.mxu0 0.0
    %1133 = vmatpush.xpose.msra.mxu0 %v1116
    %1134 = vmatmul.f32.gmra.mxu0 %v1114
    %v1135 = vpop.f32.mrf.mxu0
    %v1136 = vadd.f32 0.0, %v1135
    %1137 = vdwg.mxu0
    %v1138 = vsel %vm429, %v1136, -inf
    %1139 = vmax.xlane.f32.xlu0 %v1138
    %v1140 = vpop.xlane.xlu0 %1139
    %v1141 = vsub.f32 %v1136, %v1140
    %v1142 = vmul.f32 %v1141, 1.442695
    %v1143 = vpow.pop %v1142
    %v1144 = vsel %vm429, %v1143, 0.0
    %1145 = vadd.xlane.f32.xlu0 %v1144
    %v1146 = vpop.xlane.xlu0 %1145
    %v1147 = vrcp.pop %v1146
    %1148 = vrot.lane.b32.xlu0 %v948, 112
    %v1149 = vpop.permute.xlu0 %1148
    %v1152 = vsel %vm429, %v1143, 0
    %1154 = vmatpush.msra.mxu0 0.0
    %1155 = vmatpush.msra.mxu0 0.0
    %1156 = vmatpush.msra.mxu0 0.0
    %1157 = vmatpush.msra.mxu0 0.0
    %1158 = vmatpush.msra.mxu0 0.0
    %1159 = vmatpush.msra.mxu0 0.0
    %1160 = vmatpush.msra.mxu0 0.0
    %1161 = vmatpush.msra.mxu0 0.0
    %1162 = vmatpush.msra.mxu0 0.0
    %1163 = vmatpush.msra.mxu0 0.0
    %1164 = vmatpush.msra.mxu0 0.0
    %1165 = vmatpush.msra.mxu0 0.0
    %1166 = vmatpush.msra.mxu0 0.0
    %1167 = vmatpush.msra.mxu0 0.0
    %1168 = vmatpush.msra.mxu0 0.0
    %1169 = vmatpush.msra.mxu0 %v1149
    %1170 = vmatmul.f32.gmra.mxu0 %v1152
    %v1171 = vpop.f32.mrf.mxu0
    %v1172 = vadd.f32 0.0, %v1171
    %1173 = vdwg.mxu0
    %v1174 = vmul.f32 %v1172, %v1147
    %v1176 = vrot.slane %v1174, 1
    %v1177 = vrot.slane %v1174, 2
    %v1178 = vrot.slane %v1174, 3
    %v1179 = vrot.slane %v1174, 4
    %v1180 = vrot.slane %v1174, 5
    %v1181 = vrot.slane %v1174, 6
    %v1182 = vrot.slane %v1174, 7
    %v1183 = vperm.slane %v1174, 0
    %v1184 = vperm.slane %v1176, 0
    %v1185 = vperm.slane %v1177, 0
    %v1186 = vperm.slane %v1178, 0
    %v1187 = vperm.slane %v1179, 0
    %v1188 = vperm.slane %v1180, 0
    %v1189 = vperm.slane %v1181, 0
    %v1190 = vperm.slane %v1182, 0
    %1191 = vrot.lane.b32.xlu0 %v1183, 16
    %v1192 = vpop.permute.xlu0 %1191
    %1193 = vrot.lane.b32.xlu0 %v1184, 16
    %v1194 = vpop.permute.xlu0 %1193
    %1195 = vrot.lane.b32.xlu0 %v1185, 16
    %v1196 = vpop.permute.xlu0 %1195
    %1197 = vrot.lane.b32.xlu0 %v1186, 16
    %v1198 = vpop.permute.xlu0 %1197
    %1199 = vrot.lane.b32.xlu0 %v1187, 16
    %v1200 = vpop.permute.xlu0 %1199
    %1201 = vrot.lane.b32.xlu0 %v1188, 16
    %v1202 = vpop.permute.xlu0 %1201
    %1203 = vrot.lane.b32.xlu0 %v1189, 16
    %v1204 = vpop.permute.xlu0 %1203
    %1205 = vrot.lane.b32.xlu0 %v1190, 16
    %v1206 = vpop.permute.xlu0 %1205
    %1215 = vst.msk [vmem:[#allocation2 + $0x1] sm:$0x1] %vm747, %v1192
    %1216 = vst.msk [vmem:[#allocation2 + $0x3] sm:$0x1] %vm747, %v1194
    %1217 = vst.msk [vmem:[#allocation2 + $0x5] sm:$0x1] %vm747, %v1196
    %1218 = vst.msk [vmem:[#allocation2 + $0x7] sm:$0x1] %vm747, %v1198
    %1219 = vst.msk [vmem:[#allocation2 + $0x9] sm:$0x1] %vm747, %v1200
    %1220 = vst.msk [vmem:[#allocation2 + $0xb] sm:$0x1] %vm747, %v1202
    %1221 = vst.msk [vmem:[#allocation2 + $0xd] sm:$0x1] %vm747, %v1204
    %1222 = vst.msk [vmem:[#allocation2 + $0xf] sm:$0x1] %vm747, %v1206
    %1223 = vrot.lane.b32.xlu0 %v884, 104
    %v1224 = vpop.permute.xlu0 %1223
    %1225 = vrot.lane.b32.xlu0 %v899, 104
    %v1226 = vpop.permute.xlu0 %1225
    %v1227 = vsel %vm429, %v1224, 0
    %v1229 = vsel %vm429, %v1226, 0
    %1231 = vmatpush.xpose.msra.mxu0 0.0
    %1232 = vmatpush.xpose.msra.mxu0 0.0
    %1233 = vmatpush.xpose.msra.mxu0 0.0
    %1234 = vmatpush.xpose.msra.mxu0 0.0
    %1235 = vmatpush.xpose.msra.mxu0 0.0
    %1236 = vmatpush.xpose.msra.mxu0 0.0
    %1237 = vmatpush.xpose.msra.mxu0 0.0
    %1238 = vmatpush.xpose.msra.mxu0 0.0
    %1239 = vmatpush.xpose.msra.mxu0 0.0
    %1240 = vmatpush.xpose.msra.mxu0 0.0
    %1241 = vmatpush.xpose.msra.mxu0 0.0
    %1242 = vmatpush.xpose.msra.mxu0 0.0
    %1243 = vmatpush.xpose.msra.mxu0 0.0
    %1244 = vmatpush.xpose.msra.mxu0 0.0
    %1245 = vmatpush.xpose.msra.mxu0 0.0
    %1246 = vmatpush.xpose.msra.mxu0 %v1229
    %1247 = vmatmul.f32.gmra.mxu0 %v1227
    %v1248 = vpop.f32.mrf.mxu0
    %v1249 = vadd.f32 0.0, %v1248
    %1250 = vdwg.mxu0
    %v1251 = vsel %vm429, %v1249, -inf
    %1252 = vmax.xlane.f32.xlu0 %v1251
    %v1253 = vpop.xlane.xlu0 %1252
    %v1254 = vsub.f32 %v1249, %v1253
    %v1255 = vmul.f32 %v1254, 1.442695
    %v1256 = vpow.pop %v1255
    %v1257 = vsel %vm429, %v1256, 0.0
    %1258 = vadd.xlane.f32.xlu0 %v1257
    %v1259 = vpop.xlane.xlu0 %1258
    %v1260 = vrcp.pop %v1259
    %1261 = vrot.lane.b32.xlu0 %v948, 104
    %v1262 = vpop.permute.xlu0 %1261
    %v1265 = vsel %vm429, %v1256, 0
    %1267 = vmatpush.msra.mxu0 0.0
    %1268 = vmatpush.msra.mxu0 0.0
    %1269 = vmatpush.msra.mxu0 0.0
    %1270 = vmatpush.msra.mxu0 0.0
    %1271 = vmatpush.msra.mxu0 0.0
    %1272 = vmatpush.msra.mxu0 0.0
    %1273 = vmatpush.msra.mxu0 0.0
    %1274 = vmatpush.msra.mxu0 0.0
    %1275 = vmatpush.msra.mxu0 0.0
    %1276 = vmatpush.msra.mxu0 0.0
    %1277 = vmatpush.msra.mxu0 0.0
    %1278 = vmatpush.msra.mxu0 0.0
    %1279 = vmatpush.msra.mxu0 0.0
    %1280 = vmatpush.msra.mxu0 0.0
    %1281 = vmatpush.msra.mxu0 0.0
    %1282 = vmatpush.msra.mxu0 %v1262
    %1283 = vmatmul.f32.gmra.mxu0 %v1265
    %v1284 = vpop.f32.mrf.mxu0
    %v1285 = vadd.f32 0.0, %v1284
    %1286 = vdwg.mxu0
    %v1287 = vmul.f32 %v1285, %v1260
    %v1289 = vrot.slane %v1287, 1
    %v1290 = vrot.slane %v1287, 2
    %v1291 = vrot.slane %v1287, 3
    %v1292 = vrot.slane %v1287, 4
    %v1293 = vrot.slane %v1287, 5
    %v1294 = vrot.slane %v1287, 6
    %v1295 = vrot.slane %v1287, 7
    %v1296 = vperm.slane %v1287, 0
    %v1297 = vperm.slane %v1289, 0
    %v1298 = vperm.slane %v1290, 0
    %v1299 = vperm.slane %v1291, 0
    %v1300 = vperm.slane %v1292, 0
    %v1301 = vperm.slane %v1293, 0
    %v1302 = vperm.slane %v1294, 0
    %v1303 = vperm.slane %v1295, 0
    %1304 = vrot.lane.b32.xlu0 %v1296, 24
    %v1305 = vpop.permute.xlu0 %1304
    %1306 = vrot.lane.b32.xlu0 %v1297, 24
    %v1307 = vpop.permute.xlu0 %1306
    %1308 = vrot.lane.b32.xlu0 %v1298, 24
    %v1309 = vpop.permute.xlu0 %1308
    %1310 = vrot.lane.b32.xlu0 %v1299, 24
    %v1311 = vpop.permute.xlu0 %1310
    %1312 = vrot.lane.b32.xlu0 %v1300, 24
    %v1313 = vpop.permute.xlu0 %1312
    %1314 = vrot.lane.b32.xlu0 %v1301, 24
    %v1315 = vpop.permute.xlu0 %1314
    %1316 = vrot.lane.b32.xlu0 %v1302, 24
    %v1317 = vpop.permute.xlu0 %1316
    %1318 = vrot.lane.b32.xlu0 %v1303, 24
    %v1319 = vpop.permute.xlu0 %1318
    %1328 = vst.msk [vmem:[#allocation2 + $0x1] sm:$0x1] %vm861, %v1305
    %1329 = vst.msk [vmem:[#allocation2 + $0x3] sm:$0x1] %vm861, %v1307
    %1330 = vst.msk [vmem:[#allocation2 + $0x5] sm:$0x1] %vm861, %v1309
    %1331 = vst.msk [vmem:[#allocation2 + $0x7] sm:$0x1] %vm861, %v1311
    %1332 = vst.msk [vmem:[#allocation2 + $0x9] sm:$0x1] %vm861, %v1313
    %1333 = vst.msk [vmem:[#allocation2 + $0xb] sm:$0x1] %vm861, %v1315
    %1334 = vst.msk [vmem:[#allocation2 + $0xd] sm:$0x1] %vm861, %v1317
    %1335 = vst.msk [vmem:[#allocation2 + $0xf] sm:$0x1] %vm861, %v1319
    %v1336 = vld [vmem:[#allocation2] sm:$0x3]
    %v1337 = vld [vmem:[#allocation2 + $0x2] sm:$0x3]
    %v1338 = vld [vmem:[#allocation2 + $0x4] sm:$0x3]
    %v1339 = vld [vmem:[#allocation2 + $0x6] sm:$0x3]
    %v1340 = vld [vmem:[#allocation2 + $0x8] sm:$0x3]
    %v1341 = vld [vmem:[#allocation2 + $0xa] sm:$0x3]
    %v1342 = vld [vmem:[#allocation2 + $0xc] sm:$0x3]
    %v1343 = vld [vmem:[#allocation2 + $0xe] sm:$0x3]
    %v1344 = vld [vmem:[#allocation9] sm:$0xff]
    %v1345 = vld [vmem:[#allocation9 + $0x8] sm:$0xff]
    %v1346 = vld [vmem:[#allocation9 + $0x10] sm:$0xff]
    %v1347 = vld [vmem:[#allocation9 + $0x18] sm:$0xff]
    %v1348 = vld [vmem:[%s10] sm:$0x1]
    %v1350 = vperm.slane %v1348, 0
    %1360 = vst [vmem:[#allocation1] ss:$4 sm:$0xff] %v1336
    %s1361 = scalar_lea.vmem [#allocation1], 1
    %1362 = vst [vmem:[%s1361] ss:$4 sm:$0xff] %v1337
    %s1363 = scalar_lea.vmem [#allocation1], 2
    %1364 = vst [vmem:[%s1363] ss:$4 sm:$0xff] %v1338
    %s1365 = scalar_lea.vmem [#allocation1], 3
    %1366 = vst [vmem:[%s1365] ss:$4 sm:$0xff] %v1339
    %s1367 = scalar_lea.vmem [#allocation1], 32
    %1368 = vst [vmem:[%s1367] ss:$4 sm:$0xff] %v1340
    %s1369 = scalar_lea.vmem [#allocation1], 33
    %1370 = vst [vmem:[%s1369] ss:$4 sm:$0xff] %v1341
    %s1371 = scalar_lea.vmem [#allocation1], 34
    %1372 = vst [vmem:[%s1371] ss:$4 sm:$0xff] %v1342
    %s1373 = scalar_lea.vmem [#allocation1], 35
    %1374 = vst [vmem:[%s1373] ss:$4 sm:$0xff] %v1343
    %v1375 = vld.sshfl [vmem:[#allocation1] sm:$0xff pattern:$0x73625140]
    %v1376 = vld.sshfl [vmem:[#allocation1 + $0x20] sm:$0xff pattern:$0x73625140]
    %v1377 = vsel %vm198, %v1375, 0
    %v1379 = vsel %vm198, %v1376, 0
    %1381 = vmatpush.msra.mxu0 0.0
    %1382 = vmatpush.msra.mxu0 0.0
    %1383 = vmatpush.msra.mxu0 0.0
    %1384 = vmatpush.msra.mxu0 0.0
    %1385 = vmatpush.msra.mxu0 0.0
    %1386 = vmatpush.msra.mxu0 0.0
    %1387 = vmatpush.msra.mxu0 0.0
    %1388 = vmatpush.msra.mxu0 0.0
    %1389 = vmatpush.msra.mxu0 0.0
    %1390 = vmatpush.msra.mxu0 0.0
    %1391 = vmatpush.msra.mxu0 0.0
    %1392 = vmatpush.msra.mxu0 0.0
    %1393 = vmatpush.msra.mxu0 %v1347
    %1394 = vmatpush.msra.mxu0 %v1346
    %1395 = vmatpush.msra.mxu0 %v1345
    %1396 = vmatpush.msra.mxu0 %v1344
    %1397 = vmatmul.f32.gmra.mxu0 %v1377
    %v1398 = vpop.f32.mrf.mxu0
    %v1399 = vadd.f32 %v1350, %v1398
    %1400 = vmatmul.f32.gmra.mxu0 %v1379
    %v1401 = vpop.f32.mrf.mxu0
    %v1402 = vadd.f32 %v1350, %v1401
    %1403 = vdwg.mxu0
    %v1406 = vrot.slane %v1399, 2
    %v1407 = vrot.slane %v1399, 4
    %v1408 = vrot.slane %v1399, 6
    %v1409 = vrot.slane %v1402, 2
    %v1410 = vrot.slane %v1402, 4
    %v1411 = vrot.slane %v1402, 6
    %v1418 = vadd.f32 %v141, %v1399
    %v1419 = vadd.f32 %v142, %v1406
    %v1420 = vadd.f32 %v143, %v1407
    %v1421 = vadd.f32 %v144, %v1408
    %v1422 = vadd.f32 %v145, %v1402
    %v1423 = vadd.f32 %v146, %v1409
    %v1424 = vadd.f32 %v147, %v1410
    %v1425 = vadd.f32 %v148, %v1411
    %1434 = vst [vmem:[#allocation1] ss:$4 sm:$0xff] %v1418
    %s1435 = scalar_lea.vmem [#allocation1], 1
    %1436 = vst [vmem:[%s1435] ss:$4 sm:$0xff] %v1419
    %s1437 = scalar_lea.vmem [#allocation1], 2
    %1438 = vst [vmem:[%s1437] ss:$4 sm:$0xff] %v1420
    %s1439 = scalar_lea.vmem [#allocation1], 3
    %1440 = vst [vmem:[%s1439] ss:$4 sm:$0xff] %v1421
    %s1441 = scalar_lea.vmem [#allocation1], 32
    %1442 = vst [vmem:[%s1441] ss:$4 sm:$0xff] %v1422
    %s1443 = scalar_lea.vmem [#allocation1], 33
    %1444 = vst [vmem:[%s1443] ss:$4 sm:$0xff] %v1423
    %s1445 = scalar_lea.vmem [#allocation1], 34
    %1446 = vst [vmem:[%s1445] ss:$4 sm:$0xff] %v1424
    %s1447 = scalar_lea.vmem [#allocation1], 35
    %1448 = vst [vmem:[%s1447] ss:$4 sm:$0xff] %v1425
    %v1449 = vld.sshfl [vmem:[#allocation1] sm:$0xff pattern:$0x73625140]
    %v1450 = vld.sshfl [vmem:[#allocation1 + $0x20] sm:$0xff pattern:$0x73625140]
    %v1453 = vsel %vm198, %v1449, 0.0
    %1454 = vadd.xlane.f32.xlu0 %v1453
    %v1455 = vpop.xlane.xlu0 %1454
    %v1456 = vsel %vm198, %v1450, 0.0
    %1457 = vadd.xlane.f32.xlu0 %v1456
    %v1458 = vpop.xlane.xlu0 %1457
    %v1459 = vrcp.pop 32.0
    %v1460 = vmul.f32 32.0, %v1459
    %v1461 = vsub.f32 1.0, %v1460
    %v1462 = vmul.f32 %v1459, %v1461
    %v1463 = vadd.f32 %v1459, %v1462
    %vm1464 = vweird.f32 %v1459
    %v1465 = vsel %vm1464, %v1459, %v1463
    %v1466 = vmul.f32 %v1455, %v1465
    %v1467 = vmul.f32 %v1458, %v1465
    %v1471 = vunpack.c.l.s4 269488144
    %v1472 = vunpack.c.0.s8 %v1471
    %v1473 = vperm.slane %v1466, %v1472
    %v1475 = vunpack.c.l.s4 842150450
    %v1476 = vunpack.c.0.s8 %v1475
    %v1477 = vperm.slane %v1466, %v1476
    %v1479 = vunpack.c.l.s4 1414812756
    %v1480 = vunpack.c.0.s8 %v1479
    %v1481 = vperm.slane %v1466, %v1480
    %v1483 = vunpack.c.l.s4 1987475062
    %v1484 = vunpack.c.0.s8 %v1483
    %v1485 = vperm.slane %v1466, %v1484
    %v1487 = vunpack.c.l.s4 269488144
    %v1488 = vunpack.c.0.s8 %v1487
    %v1489 = vperm.slane %v1467, %v1488
    %v1491 = vunpack.c.l.s4 842150450
    %v1492 = vunpack.c.0.s8 %v1491
    %v1493 = vperm.slane %v1467, %v1492
    %v1495 = vunpack.c.l.s4 1414812756
    %v1496 = vunpack.c.0.s8 %v1495
    %v1497 = vperm.slane %v1467, %v1496
    %v1499 = vunpack.c.l.s4 1987475062
    %v1500 = vunpack.c.0.s8 %v1499
    %v1501 = vperm.slane %v1467, %v1500
    %v1510 = vsub.f32 %v1418, %v1473
    %v1511 = vsub.f32 %v1419, %v1477
    %v1512 = vsub.f32 %v1420, %v1481
    %v1513 = vsub.f32 %v1421, %v1485
    %v1514 = vsub.f32 %v1422, %v1489
    %v1515 = vsub.f32 %v1423, %v1493
    %v1516 = vsub.f32 %v1424, %v1497
    %v1517 = vsub.f32 %v1425, %v1501
    %v1518 = vmul.f32 %v1510, %v1510
    %v1519 = vmul.f32 %v1511, %v1511
    %v1520 = vmul.f32 %v1512, %v1512
    %v1521 = vmul.f32 %v1513, %v1513
    %v1522 = vmul.f32 %v1514, %v1514
    %v1523 = vmul.f32 %v1515, %v1515
    %v1524 = vmul.f32 %v1516, %v1516
    %v1525 = vmul.f32 %v1517, %v1517
    %1534 = vst [vmem:[#allocation1] ss:$4 sm:$0xff] %v1518
    %s1535 = scalar_lea.vmem [#allocation1], 1
    %1536 = vst [vmem:[%s1535] ss:$4 sm:$0xff] %v1519
    %s1537 = scalar_lea.vmem [#allocation1], 2
    %1538 = vst [vmem:[%s1537] ss:$4 sm:$0xff] %v1520
    %s1539 = scalar_lea.vmem [#allocation1], 3
    %1540 = vst [vmem:[%s1539] ss:$4 sm:$0xff] %v1521
    %s1541 = scalar_lea.vmem [#allocation1], 32
    %1542 = vst [vmem:[%s1541] ss:$4 sm:$0xff] %v1522
    %s1543 = scalar_lea.vmem [#allocation1], 33
    %1544 = vst [vmem:[%s1543] ss:$4 sm:$0xff] %v1523
    %s1545 = scalar_lea.vmem [#allocation1], 34
    %1546 = vst [vmem:[%s1545] ss:$4 sm:$0xff] %v1524
    %s1547 = scalar_lea.vmem [#allocation1], 35
    %1548 = vst [vmem:[%s1547] ss:$4 sm:$0xff] %v1525
    %v1549 = vld.sshfl [vmem:[#allocation1] sm:$0xff pattern:$0x73625140]
    %v1550 = vld.sshfl [vmem:[#allocation1 + $0x20] sm:$0xff pattern:$0x73625140]
    %v1553 = vsel %vm198, %v1549, 0.0
    %1554 = vadd.xlane.f32.xlu0 %v1553
    %v1555 = vpop.xlane.xlu0 %1554
    %v1556 = vsel %vm198, %v1550, 0.0
    %1557 = vadd.xlane.f32.xlu0 %v1556
    %v1558 = vpop.xlane.xlu0 %1557
    %v1559 = vmul.f32 %v1555, %v1465
    %v1560 = vmul.f32 %v1558, %v1465
    %v1561 = vadd.f32 %v1559, 1e-05
    %v1562 = vadd.f32 %v1560, 1e-05
    %v1563 = vrsqrt.pop %v1561
    %v1564 = vmul.f32 %v1563, %v1561
    %v1565 = vmul.f32 %v1564, %v1563
    %v1566 = vmul.f32 0.5, %v1565
    %v1567 = vsub.f32 1.5, %v1566
    %v1568 = vmul.f32 %v1563, %v1567
    %vm1569 = vweird.f32 %v1561
    %vm1570 = vweird.f32 %v1563
    %vm1571 = vmor %vm1569, %vm1570
    %v1572 = vsel %vm1571, %v1563, %v1568
    %v1573 = vrsqrt.pop %v1562
    %v1574 = vmul.f32 %v1573, %v1562
    %v1575 = vmul.f32 %v1574, %v1573
    %v1576 = vmul.f32 0.5, %v1575
    %v1577 = vsub.f32 1.5, %v1576
    %v1578 = vmul.f32 %v1573, %v1577
    %vm1579 = vweird.f32 %v1562
    %vm1580 = vweird.f32 %v1573
    %vm1581 = vmor %vm1579, %vm1580
    %v1582 = vsel %vm1581, %v1573, %v1578
    %v1586 = vunpack.c.l.s4 269488144
    %v1587 = vunpack.c.0.s8 %v1586
    %v1588 = vperm.slane %v1572, %v1587
    %v1590 = vunpack.c.l.s4 842150450
    %v1591 = vunpack.c.0.s8 %v1590
    %v1592 = vperm.slane %v1572, %v1591
    %v1594 = vunpack.c.l.s4 1414812756
    %v1595 = vunpack.c.0.s8 %v1594
    %v1596 = vperm.slane %v1572, %v1595
    %v1598 = vunpack.c.l.s4 1987475062
    %v1599 = vunpack.c.0.s8 %v1598
    %v1600 = vperm.slane %v1572, %v1599
    %v1602 = vunpack.c.l.s4 269488144
    %v1603 = vunpack.c.0.s8 %v1602
    %v1604 = vperm.slane %v1582, %v1603
    %v1606 = vunpack.c.l.s4 842150450
    %v1607 = vunpack.c.0.s8 %v1606
    %v1608 = vperm.slane %v1582, %v1607
    %v1610 = vunpack.c.l.s4 1414812756
    %v1611 = vunpack.c.0.s8 %v1610
    %v1612 = vperm.slane %v1582, %v1611
    %v1614 = vunpack.c.l.s4 1987475062
    %v1615 = vunpack.c.0.s8 %v1614
    %v1616 = vperm.slane %v1582, %v1615
    %v1625 = vmul.f32 %v1510, %v1588
    %v1626 = vmul.f32 %v1511, %v1592
    %v1627 = vmul.f32 %v1512, %v1596
    %v1628 = vmul.f32 %v1513, %v1600
    %v1629 = vmul.f32 %v1514, %v1604
    %v1630 = vmul.f32 %v1515, %v1608
    %v1631 = vmul.f32 %v1516, %v1612
    %v1632 = vmul.f32 %v1517, %v1616
    %v1633 = vld [vmem:[%s15] sm:$0x1]
    %v1635 = vperm.slane %v1633, 0
    %v1637 = vrot.slane %v1635, 2
    %v1638 = vrot.slane %v1635, 4
    %v1639 = vrot.slane %v1635, 6
    %v1643 = vmul.f32 %v1625, %v1635
    %v1644 = vmul.f32 %v1626, %v1637
    %v1645 = vmul.f32 %v1627, %v1638
    %v1646 = vmul.f32 %v1628, %v1639
    %v1647 = vmul.f32 %v1629, %v1635
    %v1648 = vmul.f32 %v1630, %v1637
    %v1649 = vmul.f32 %v1631, %v1638
    %v1650 = vmul.f32 %v1632, %v1639
    %v1651 = vld [vmem:[%s16] sm:$0x1]
    %v1653 = vperm.slane %v1651, 0
    %v1655 = vrot.slane %v1653, 2
    %v1656 = vrot.slane %v1653, 4
    %v1657 = vrot.slane %v1653, 6
    %v1661 = vadd.f32 %v1643, %v1653
    %v1662 = vadd.f32 %v1644, %v1655
    %v1663 = vadd.f32 %v1645, %v1656
    %v1664 = vadd.f32 %v1646, %v1657
    %v1665 = vadd.f32 %v1647, %v1653
    %v1666 = vadd.f32 %v1648, %v1655
    %v1667 = vadd.f32 %v1649, %v1656
    %v1668 = vadd.f32 %v1650, %v1657
    %v1669 = vld [vmem:[#allocation11] sm:$0xff]
    %v1670 = vld [vmem:[#allocation11 + $0x8] sm:$0xff]
    %v1671 = vld [vmem:[#allocation11 + $0x10] sm:$0xff]
    %v1672 = vld [vmem:[#allocation11 + $0x18] sm:$0xff]
    %v1673 = vld [vmem:[%s12] sm:$0x1]
    %v1675 = vperm.slane %v1673, 0
    %1685 = vst [vmem:[#allocation1] ss:$4 sm:$0xff] %v1661
    %s1686 = scalar_lea.vmem [#allocation1], 1
    %1687 = vst [vmem:[%s1686] ss:$4 sm:$0xff] %v1662
    %s1688 = scalar_lea.vmem [#allocation1], 2
    %1689 = vst [vmem:[%s1688] ss:$4 sm:$0xff] %v1663
    %s1690 = scalar_lea.vmem [#allocation1], 3
    %1691 = vst [vmem:[%s1690] ss:$4 sm:$0xff] %v1664
    %s1692 = scalar_lea.vmem [#allocation1], 32
    %1693 = vst [vmem:[%s1692] ss:$4 sm:$0xff] %v1665
    %s1694 = scalar_lea.vmem [#allocation1], 33
    %1695 = vst [vmem:[%s1694] ss:$4 sm:$0xff] %v1666
    %s1696 = scalar_lea.vmem [#allocation1], 34
    %1697 = vst [vmem:[%s1696] ss:$4 sm:$0xff] %v1667
    %s1698 = scalar_lea.vmem [#allocation1], 35
    %1699 = vst [vmem:[%s1698] ss:$4 sm:$0xff] %v1668
    %v1700 = vld.sshfl [vmem:[#allocation1] sm:$0xff pattern:$0x73625140]
    %v1701 = vld.sshfl [vmem:[#allocation1 + $0x20] sm:$0xff pattern:$0x73625140]
    %v1702 = vsel %vm198, %v1700, 0
    %v1704 = vsel %vm198, %v1701, 0
    %1706 = vmatpush.msra.mxu0 0.0
    %1707 = vmatpush.msra.mxu0 0.0
    %1708 = vmatpush.msra.mxu0 0.0
    %1709 = vmatpush.msra.mxu0 0.0
    %1710 = vmatpush.msra.mxu0 0.0
    %1711 = vmatpush.msra.mxu0 0.0
    %1712 = vmatpush.msra.mxu0 0.0
    %1713 = vmatpush.msra.mxu0 0.0
    %1714 = vmatpush.msra.mxu0 0.0
    %1715 = vmatpush.msra.mxu0 0.0
    %1716 = vmatpush.msra.mxu0 0.0
    %1717 = vmatpush.msra.mxu0 0.0
    %1718 = vmatpush.msra.mxu0 %v1672
    %1719 = vmatpush.msra.mxu0 %v1671
    %1720 = vmatpush.msra.mxu0 %v1670
    %1721 = vmatpush.msra.mxu0 %v1669
    %1722 = vmatmul.f32.gmra.mxu0 %v1702
    %v1723 = vpop.f32.mrf.mxu0
    %v1724 = vadd.f32 %v1675, %v1723
    %1725 = vmatmul.f32.gmra.mxu0 %v1704
    %v1726 = vpop.f32.mrf.mxu0
    %v1727 = vadd.f32 %v1675, %v1726
    %1728 = vdwg.mxu0
    %v1729 = vmax.f32 %v1724, 0.0
    %v1730 = vmax.f32 %v1727, 0.0
    %v1731 = vld [vmem:[%s13] sm:$0xff]
    %v1732 = vld [vmem:[%s13 + $0x8] sm:$0xff]
    %v1733 = vld [vmem:[%s13 + $0x10] sm:$0xff]
    %v1734 = vld [vmem:[%s13 + $0x18] sm:$0xff]
    %v1735 = vld [vmem:[%s13 + $0x20] sm:$0xff]
    %v1736 = vld [vmem:[%s13 + $0x28] sm:$0xff]
    %v1737 = vld [vmem:[%s13 + $0x30] sm:$0xff]
    %v1738 = vld [vmem:[%s13 + $0x38] sm:$0xff]
    %v1739 = vld [vmem:[%s14] sm:$0x1]
    %v1741 = vperm.slane %v1739, 0
    %vm1743 = vcmask 523264
    %v1745 = vsel %vm1743, %v1729, 0
    %v1748 = vsel %vm1743, %v1730, 0
    %1750 = vmatpush.msra.mxu0 0.0
    %1751 = vmatpush.msra.mxu0 0.0
    %1752 = vmatpush.msra.mxu0 0.0
    %1753 = vmatpush.msra.mxu0 0.0
    %1754 = vmatpush.msra.mxu0 0.0
    %1755 = vmatpush.msra.mxu0 0.0
    %1756 = vmatpush.msra.mxu0 0.0
    %1757 = vmatpush.msra.mxu0 0.0
    %1758 = vmatpush.msra.mxu0 %v1738
    %1759 = vmatpush.msra.mxu0 %v1737
    %1760 = vmatpush.msra.mxu0 %v1736
    %1761 = vmatpush.msra.mxu0 %v1735
    %1762 = vmatpush.msra.mxu0 %v1734
    %1763 = vmatpush.msra.mxu0 %v1733
    %1764 = vmatpush.msra.mxu0 %v1732
    %1765 = vmatpush.msra.mxu0 %v1731
    %1766 = vmatmul.f32.gmra.mxu0 %v1745
    %v1767 = vpop.f32.mrf.mxu0
    %v1768 = vadd.f32 %v1741, %v1767
    %1769 = vmatmul.f32.gmra.mxu0 %v1748
    %v1770 = vpop.f32.mrf.mxu0
    %v1771 = vadd.f32 %v1741, %v1770
    %1772 = vdwg.mxu0
    %v1775 = vrot.slane %v1768, 2
    %v1776 = vrot.slane %v1768, 4
    %v1777 = vrot.slane %v1768, 6
    %v1778 = vrot.slane %v1771, 2
    %v1779 = vrot.slane %v1771, 4
    %v1780 = vrot.slane %v1771, 6
    %v1787 = vadd.f32 %v1661, %v1768
    %v1788 = vadd.f32 %v1662, %v1775
    %v1789 = vadd.f32 %v1663, %v1776
    %v1790 = vadd.f32 %v1664, %v1777
    %v1791 = vadd.f32 %v1665, %v1771
    %v1792 = vadd.f32 %v1666, %v1778
    %v1793 = vadd.f32 %v1667, %v1779
    %v1794 = vadd.f32 %v1668, %v1780
    %1803 = vst [vmem:[#allocation1] ss:$4 sm:$0xff] %v1787
    %s1804 = scalar_lea.vmem [#allocation1], 1
    %1805 = vst [vmem:[%s1804] ss:$4 sm:$0xff] %v1788
    %s1806 = scalar_lea.vmem [#allocation1], 2
    %1807 = vst [vmem:[%s1806] ss:$4 sm:$0xff] %v1789
    %s1808 = scalar_lea.vmem [#allocation1], 3
    %1809 = vst [vmem:[%s1808] ss:$4 sm:$0xff] %v1790
    %s1810 = scalar_lea.vmem [#allocation1], 32
    %1811 = vst [vmem:[%s1810] ss:$4 sm:$0xff] %v1791
    %s1812 = scalar_lea.vmem [#allocation1], 33
    %1813 = vst [vmem:[%s1812] ss:$4 sm:$0xff] %v1792
    %s1814 = scalar_lea.vmem [#allocation1], 34
    %1815 = vst [vmem:[%s1814] ss:$4 sm:$0xff] %v1793
    %s1816 = scalar_lea.vmem [#allocation1], 35
    %1817 = vst [vmem:[%s1816] ss:$4 sm:$0xff] %v1794
    %v1818 = vld.sshfl [vmem:[#allocation1] sm:$0xff pattern:$0x73625140]
    %v1819 = vld.sshfl [vmem:[#allocation1 + $0x20] sm:$0xff pattern:$0x73625140]
    %v1822 = vsel %vm198, %v1818, 0.0
    %1823 = vadd.xlane.f32.xlu0 %v1822
    %v1824 = vpop.xlane.xlu0 %1823
    %v1825 = vsel %vm198, %v1819, 0.0
    %1826 = vadd.xlane.f32.xlu0 %v1825
    %v1827 = vpop.xlane.xlu0 %1826
    %v1828 = vmul.f32 %v1824, %v1465
    %v1829 = vmul.f32 %v1827, %v1465
    %v1833 = vunpack.c.l.s4 269488144
    %v1834 = vunpack.c.0.s8 %v1833
    %v1835 = vperm.slane %v1828, %v1834
    %v1837 = vunpack.c.l.s4 842150450
    %v1838 = vunpack.c.0.s8 %v1837
    %v1839 = vperm.slane %v1828, %v1838
    %v1841 = vunpack.c.l.s4 1414812756
    %v1842 = vunpack.c.0.s8 %v1841
    %v1843 = vperm.slane %v1828, %v1842
    %v1845 = vunpack.c.l.s4 1987475062
    %v1846 = vunpack.c.0.s8 %v1845
    %v1847 = vperm.slane %v1828, %v1846
    %v1849 = vunpack.c.l.s4 269488144
    %v1850 = vunpack.c.0.s8 %v1849
    %v1851 = vperm.slane %v1829, %v1850
    %v1853 = vunpack.c.l.s4 842150450
    %v1854 = vunpack.c.0.s8 %v1853
    %v1855 = vperm.slane %v1829, %v1854
    %v1857 = vunpack.c.l.s4 1414812756
    %v1858 = vunpack.c.0.s8 %v1857
    %v1859 = vperm.slane %v1829, %v1858
    %v1861 = vunpack.c.l.s4 1987475062
    %v1862 = vunpack.c.0.s8 %v1861
    %v1863 = vperm.slane %v1829, %v1862
    %v1872 = vsub.f32 %v1787, %v1835
    %v1873 = vsub.f32 %v1788, %v1839
    %v1874 = vsub.f32 %v1789, %v1843
    %v1875 = vsub.f32 %v1790, %v1847
    %v1876 = vsub.f32 %v1791, %v1851
    %v1877 = vsub.f32 %v1792, %v1855
    %v1878 = vsub.f32 %v1793, %v1859
    %v1879 = vsub.f32 %v1794, %v1863
    %v1880 = vmul.f32 %v1872, %v1872
    %v1881 = vmul.f32 %v1873, %v1873
    %v1882 = vmul.f32 %v1874, %v1874
    %v1883 = vmul.f32 %v1875, %v1875
    %v1884 = vmul.f32 %v1876, %v1876
    %v1885 = vmul.f32 %v1877, %v1877
    %v1886 = vmul.f32 %v1878, %v1878
    %v1887 = vmul.f32 %v1879, %v1879
    %1896 = vst [vmem:[#allocation1] ss:$4 sm:$0xff] %v1880
    %s1897 = scalar_lea.vmem [#allocation1], 1
    %1898 = vst [vmem:[%s1897] ss:$4 sm:$0xff] %v1881
    %s1899 = scalar_lea.vmem [#allocation1], 2
    %1900 = vst [vmem:[%s1899] ss:$4 sm:$0xff] %v1882
    %s1901 = scalar_lea.vmem [#allocation1], 3
    %1902 = vst [vmem:[%s1901] ss:$4 sm:$0xff] %v1883
    %s1903 = scalar_lea.vmem [#allocation1], 32
    %1904 = vst [vmem:[%s1903] ss:$4 sm:$0xff] %v1884
    %s1905 = scalar_lea.vmem [#allocation1], 33
    %1906 = vst [vmem:[%s1905] ss:$4 sm:$0xff] %v1885
    %s1907 = scalar_lea.vmem [#allocation1], 34
    %1908 = vst [vmem:[%s1907] ss:$4 sm:$0xff] %v1886
    %s1909 = scalar_lea.vmem [#allocation1], 35
    %1910 = vst [vmem:[%s1909] ss:$4 sm:$0xff] %v1887
    %v1911 = vld.sshfl [vmem:[#allocation1] sm:$0xff pattern:$0x73625140]
    %v1912 = vld.sshfl [vmem:[#allocation1 + $0x20] sm:$0xff pattern:$0x73625140]
    %v1915 = vsel %vm198, %v1911, 0.0
    %1916 = vadd.xlane.f32.xlu0 %v1915
    %v1917 = vpop.xlane.xlu0 %1916
    %v1918 = vsel %vm198, %v1912, 0.0
    %1919 = vadd.xlane.f32.xlu0 %v1918
    %v1920 = vpop.xlane.xlu0 %1919
    %v1921 = vmul.f32 %v1917, %v1465
    %v1922 = vmul.f32 %v1920, %v1465
    %v1923 = vadd.f32 %v1921, 1e-05
    %v1924 = vadd.f32 %v1922, 1e-05
    %v1925 = vrsqrt.pop %v1923
    %v1926 = vmul.f32 %v1925, %v1923
    %v1927 = vmul.f32 %v1926, %v1925
    %v1928 = vmul.f32 0.5, %v1927
    %v1929 = vsub.f32 1.5, %v1928
    %v1930 = vmul.f32 %v1925, %v1929
    %vm1931 = vweird.f32 %v1923
    %vm1932 = vweird.f32 %v1925
    %vm1933 = vmor %vm1931, %vm1932
    %v1934 = vsel %vm1933, %v1925, %v1930
    %v1935 = vrsqrt.pop %v1924
    %v1936 = vmul.f32 %v1935, %v1924
    %v1937 = vmul.f32 %v1936, %v1935
    %v1938 = vmul.f32 0.5, %v1937
    %v1939 = vsub.f32 1.5, %v1938
    %v1940 = vmul.f32 %v1935, %v1939
    %vm1941 = vweird.f32 %v1924
    %vm1942 = vweird.f32 %v1935
    %vm1943 = vmor %vm1941, %vm1942
    %v1944 = vsel %vm1943, %v1935, %v1940
    %v1948 = vunpack.c.l.s4 269488144
    %v1949 = vunpack.c.0.s8 %v1948
    %v1950 = vperm.slane %v1934, %v1949
    %v1952 = vunpack.c.l.s4 842150450
    %v1953 = vunpack.c.0.s8 %v1952
    %v1954 = vperm.slane %v1934, %v1953
    %v1956 = vunpack.c.l.s4 1414812756
    %v1957 = vunpack.c.0.s8 %v1956
    %v1958 = vperm.slane %v1934, %v1957
    %v1960 = vunpack.c.l.s4 1987475062
    %v1961 = vunpack.c.0.s8 %v1960
    %v1962 = vperm.slane %v1934, %v1961
    %v1964 = vunpack.c.l.s4 269488144
    %v1965 = vunpack.c.0.s8 %v1964
    %v1966 = vperm.slane %v1944, %v1965
    %v1968 = vunpack.c.l.s4 842150450
    %v1969 = vunpack.c.0.s8 %v1968
    %v1970 = vperm.slane %v1944, %v1969
    %v1972 = vunpack.c.l.s4 1414812756
    %v1973 = vunpack.c.0.s8 %v1972
    %v1974 = vperm.slane %v1944, %v1973
    %v1976 = vunpack.c.l.s4 1987475062
    %v1977 = vunpack.c.0.s8 %v1976
    %v1978 = vperm.slane %v1944, %v1977
    %v1987 = vmul.f32 %v1872, %v1950
    %v1988 = vmul.f32 %v1873, %v1954
    %v1989 = vmul.f32 %v1874, %v1958
    %v1990 = vmul.f32 %v1875, %v1962
    %v1991 = vmul.f32 %v1876, %v1966
    %v1992 = vmul.f32 %v1877, %v1970
    %v1993 = vmul.f32 %v1878, %v1974
    %v1994 = vmul.f32 %v1879, %v1978
    %v1995 = vld [vmem:[%s17] sm:$0x1]
    %v1997 = vperm.slane %v1995, 0
    %v1999 = vrot.slane %v1997, 2
    %v2000 = vrot.slane %v1997, 4
    %v2001 = vrot.slane %v1997, 6
    %v2005 = vmul.f32 %v1987, %v1997
    %v2006 = vmul.f32 %v1988, %v1999
    %v2007 = vmul.f32 %v1989, %v2000
    %v2008 = vmul.f32 %v1990, %v2001
    %v2009 = vmul.f32 %v1991, %v1997
    %v2010 = vmul.f32 %v1992, %v1999
    %v2011 = vmul.f32 %v1993, %v2000
    %v2012 = vmul.f32 %v1994, %v2001
    %v2013 = vld [vmem:[%s18] sm:$0x1]
    %v2015 = vperm.slane %v2013, 0
    %v2017 = vrot.slane %v2015, 2
    %v2018 = vrot.slane %v2015, 4
    %v2019 = vrot.slane %v2015, 6
    %v2023 = vadd.f32 %v2005, %v2015
    %v2024 = vadd.f32 %v2006, %v2017
    %v2025 = vadd.f32 %v2007, %v2018
    %v2026 = vadd.f32 %v2008, %v2019
    %v2027 = vadd.f32 %v2009, %v2015
    %v2028 = vadd.f32 %v2010, %v2017
    %v2029 = vadd.f32 %v2011, %v2018
    %v2030 = vadd.f32 %v2012, %v2019
    %vm2031 = vcmask 254976
    %2032 = vst.msk [vmem:[#allocation12] sm:$0x3] %vm2031, %v2023
    %2033 = vst.msk [vmem:[#allocation12 + $0x2] sm:$0x3] %vm2031, %v2024
    %2034 = vst.msk [vmem:[#allocation12 + $0x4] sm:$0x3] %vm2031, %v2025
    %2035 = vst.msk [vmem:[#allocation12 + $0x6] sm:$0x3] %vm2031, %v2026
    %2036 = vst.msk [vmem:[#allocation12 + $0x8] sm:$0x3] %vm2031, %v2027
    %2037 = vst.msk [vmem:[#allocation12 + $0xa] sm:$0x3] %vm2031, %v2028
    %2038 = vst.msk [vmem:[#allocation12 + $0xc] sm:$0x3] %vm2031, %v2029
    %2039 = vst.msk [vmem:[#allocation12 + $0xe] sm:$0x3] %vm2031, %v2030
    // Predicated region
    $region98: #{tpu_custom_call.1} parent=1 // pred_check
      _
    $region99: #{tpu_custom_call.1} parent=1 // pred_check_branch
      %2041 = sbr.rel (0) target = $region101
    $region100: #{tpu_custom_call.1} parent=1 // pred_region
      %2043 = vsyncadd [#allocation5], 0
      %s2044 = sshll.u32 [#allocation12], 4
      %s2045 = int_to_ptr.vmem [resolvable:$true] %s2044
      %s2046 = sshll.u32 %s19, 4
      %s2047 = int_to_ptr.hbm [resolvable:$true] %s2046
      %2052 = dma.vmem_to_hbm [thread:$0]  %s2045, 256, %s2047, [#allocation5], 32, 32, 2
    $region101: #{tpu_custom_call.1} parent=1 // pred_fallthru
      _
    // Predicated region
    $region102: #{tpu_custom_call.1} parent=1 // pred_check
      _
    $region103: #{tpu_custom_call.1} parent=1 // pred_check_branch
      %2054 = sbr.rel (0) target = $region105
    $region104: #{tpu_custom_call.1} parent=1 // pred_region
      %2056 = dma.done [#allocation5], 256
    $region105: #{tpu_custom_call.1} parent=1 // pred_fallthru
      _
    %2057 = vsyncpa [#allocation4], 1
    %2058 = vsyncpa [#allocation7], 1
    %2059 = vsyncpa [#allocation10], 1
    %2060 = vsyncpa [#allocation5], 1

</llo_original>
